<compile_context>
chip_gen: v7x
topology: tpu7x:2x2x1
jax: 0.10.0
libtpu: 0.0.40
codegen_flags: <defaults>
</compile_context>

<pallas_src>
import jax
import jax.numpy as jnp
from jax import lax
from jax.experimental import pallas as pl
from jax.experimental.pallas import tpu as pltpu


def _fused_embed_kernel(x_ref, w1_ref, b1_ref, w2_ref, b2_ref,
                        w3_ref, b3_ref, w4_ref, b4_ref, o_ref):
    """All 4 conv layers for one tile of G final output pixels.

    x_ref : (16*G, 16*C_in)  rows (q3, q4, g), cols (q2, kh1, kw1, ci)
    w1    : (4*C_in, C1)     rows (kh1, kw1, ci)
    w2    : (4*C1,  C2)      rows (kh2, kw2, c1)
    w3    : (4*C2,  C3)      rows (kh3, kw3, c2)
    w4    : (4*C3,  C4)      rows (kh4, kw4, c3)
    b_l   : (1, C_l) float32
    o_ref : (G, C4)
    """
    f32 = jnp.float32
    x = x_ref[...]
    k1 = w1_ref.shape[0]                      # 4 * C_in

    # Layer 1: 2x2 patch GEMM on each of the 4 (kh2, kw2) sub-patches; the
    # lane-concat of the results IS the layer-2 patch matrix (features ordered
    # (kh2, kw2, c1)), so no row shuffling is needed between layers 1 and 2.
    a = jnp.concatenate(
        [jnp.dot(x[:, k * k1:(k + 1) * k1], w1_ref[...],
                 preferred_element_type=f32) + b1_ref[...]
         for k in range(4)],
        axis=-1).astype(w2_ref.dtype)

    # Layer 2: plain GEMM, f32 accumulate.
    a = jnp.dot(a, w2_ref[...], preferred_element_type=f32) + b2_ref[...]

    # Layers 3 & 4: thanks to the hierarchical row order, the 4 children of
    # every output pixel sit in 4 contiguous, 8-aligned quarter blocks of rows:
    # re-patchify = static slice + lane concat, then GEMM.
    for w_ref, b_ref in ((w3_ref, b3_ref), (w4_ref, b4_ref)):
        m = a.shape[0] // 4
        a = jnp.concatenate([a[0:m], a[m:2 * m], a[2 * m:3 * m], a[3 * m:4 * m]],
                            axis=-1).astype(w_ref.dtype)
        a = jnp.dot(a, w_ref[...], preferred_element_type=f32) + b_ref[...]

    o_ref[...] = a.astype(o_ref.dtype)


def _pick_regions_per_step(num_regions):
    # ~512-1024 layer-1 patch rows per grid step (64 per region); keep >= 2
    # grid steps when there is enough work so v7x's two TensorCores both get a
    # share via dimension_semantics=("parallel",).  Must be a multiple of 8 so
    # every in-kernel row slice stays sublane-aligned.
    return 8 if num_regions <= 16 else 16


def embedding2222(x, params, *, compute_dtype=None, regions_per_step=None):
    """Fused forward of Embedding2222: 4 chained Conv2d(k=(2,2), s=(2,2)).

    x      : (B, C_in, H, W), H % 16 == 0 and W % 16 == 0
    params : [(w_l, b_l)] * 4 with w_l: (C_l, C_{l-1}, 2, 2), b_l: (C_l,)
    returns: (B, C_4, H // 16, W // 16)
    """
    B, C_in, H, W = x.shape
    assert H % 16 == 0 and W % 16 == 0, "4 stride-2 convs need H, W % 16 == 0"
    P, Q = H // 16, W // 16
    R = B * P * Q                                   # number of output pixels
    (w1, b1), (w2, b2), (w3, b3), (w4, b4) = params
    C1, C2, C3, C4 = (int(w.shape[0]) for w in (w1, w2, w3, w4))

    cd = jnp.dtype(compute_dtype) if compute_dtype is not None else x.dtype
    G = regions_per_step or _pick_regions_per_step(R)
    assert G % 8 == 0
    T = -(-R // G)
    R_pad = T * G

    # (C_out, C_in_l, kh, kw) -> (4*C_in_l, C_out), row order (kh, kw, ci).
    def _w2d(w):
        return jnp.transpose(w, (2, 3, 1, 0)).reshape(-1, w.shape[0]).astype(cd)

    ws = [_w2d(w1), _w2d(w2), _w2d(w3), _w2d(w4)]
    bs = [b.reshape(1, -1).astype(jnp.float32) for b in (b1, b2, b3, b4)]

    # ---- hierarchical patchify (wrapper-side layout only, no compute) ----
    # h = 16*I4 + 8*kh4 + 4*kh3 + 2*kh2 + kh1   (same decomposition for w/kw).
    xp = x.reshape(B, C_in, P, 2, 2, 2, 2, Q, 2, 2, 2, 2)
    # axes: 0:B 1:C 2:P 3:kh4 4:kh3 5:kh2 6:kh1 7:Q 8:kw4 9:kw3 10:kw2 11:kw1
    xp = xp.transpose(0, 2, 7,        # B, I4, J4     -> region index
                      4, 9,           # kh3, kw3      -> q3 (row, coarse)
                      3, 8,           # kh4, kw4      -> q4 (row, fine)
                      5, 10,          # kh2, kw2      -> q2 (feature block)
                      6, 11, 1)       # kh1, kw1, ci  -> layer-1 patch features
    xp = xp.reshape(R, 16, 16 * C_in)
    if R_pad != R:
        xp = jnp.pad(xp, ((0, R_pad - R), (0, 0), (0, 0)))
    # Group G regions per grid step; within a step rows are (q3, q4, g) so the
    # kernel's quarter-block row slices are contiguous and 8-aligned.
    xp = (xp.reshape(T, G, 16, 16 * C_in)
            .transpose(0, 2, 1, 3)
            .reshape(T * 16 * G, 16 * C_in)
            .astype(cd))

    out = pl.pallas_call(
        _fused_embed_kernel,
        out_shape=jax.ShapeDtypeStruct((R_pad, C4), x.dtype),
        grid_spec=pltpu.PrefetchScalarGridSpec(
            num_scalar_prefetch=0,
            grid=(T,),
            in_specs=[
                pl.BlockSpec((16 * G, 16 * C_in), lambda i: (i, 0)),  # patches
                pl.BlockSpec((4 * C_in, C1), lambda i: (0, 0)),   # weights and
                pl.BlockSpec((1, C1), lambda i: (0, 0)),          # biases stay
                pl.BlockSpec((4 * C1, C2), lambda i: (0, 0)),     # VMEM-resident
                pl.BlockSpec((1, C2), lambda i: (0, 0)),          # across steps
                pl.BlockSpec((4 * C2, C3), lambda i: (0, 0)),
                pl.BlockSpec((1, C3), lambda i: (0, 0)),
                pl.BlockSpec((4 * C3, C4), lambda i: (0, 0)),
                pl.BlockSpec((1, C4), lambda i: (0, 0)),
            ],
            out_specs=pl.BlockSpec((G, C4), lambda i: (i, 0)),
        ),
        compiler_params=pltpu.CompilerParams(
            dimension_semantics=("parallel",)),
    )(xp, ws[0], bs[0], ws[1], bs[1], ws[2], bs[2], ws[3], bs[3])

    return out[:R].reshape(B, P, Q, C4).transpose(0, 3, 1, 2)


def _make_params(key, in_channels, out_channels):
    chans = [in_channels, out_channels // 8, out_channels // 4,
             out_channels // 2, out_channels]
    keys = jax.random.split(key, 8)
    params = []
    for li in range(4):
        cin, cout = chans[li], chans[li + 1]
        bound = 1.0 / (cin * 4) ** 0.5           # PyTorch Conv2d default init
        w = jax.random.uniform(keys[2 * li], (cout, cin, 2, 2),
                               jnp.float32, -bound, bound)
        b = jax.random.uniform(keys[2 * li + 1], (cout,),
                               jnp.float32, -bound, bound)
        params.append((w, b))
    return params


def _conv_reference(x, params):
    y = x
    for (w, b) in params:
        y = lax.conv_general_dilated(
            y, w, window_strides=(2, 2), padding="VALID",
            dimension_numbers=("NCHW", "OIHW", "NCHW")) + b.reshape(1, -1, 1, 1)
    return y


if __name__ == "__main__":
    key = jax.random.PRNGKey(0)
    B, in_channels, out_channels = 2, 4, 32
    k1, k2, kp = jax.random.split(key, 3)
    params = _make_params(kp, in_channels, out_channels)

    # Case 1: minimal spatial size (16x16 -> 1x1): single grid step + row pad.
    x_small = jax.random.normal(k1, (B, in_channels, 16, 16), jnp.float32)
    y_small = jax.jit(lambda x: embedding2222(x, params))(x_small)
    jax.block_until_ready(y_small)
    ref_small = _conv_reference(x_small, params)
    assert y_small.shape == (B, out_channels, 1, 1), y_small.shape
    assert jnp.allclose(y_small, ref_small, atol=1e-3, rtol=1e-3), (
        "f32 (small) mismatch vs conv reference")

    # Case 2: larger spatial size (64x64 -> 4x4): multi-step "parallel" grid.
    x_big = jax.random.normal(k2, (B, in_channels, 64, 64), jnp.float32)
    y_big = jax.jit(lambda x: embedding2222(x, params))(x_big)
    jax.block_until_ready(y_big)
    ref_big = _conv_reference(x_big, params)
    assert y_big.shape == (B, out_channels, 4, 4), y_big.shape
    assert jnp.allclose(y_big, ref_big, atol=1e-3, rtol=1e-3), (
        "f32 (big) mismatch vs conv reference")

    # Case 3: bf16 operand feeding (f32 accumulate) - the fast MXU path.
    y_bf16 = jax.jit(
        lambda x: embedding2222(x, params, compute_dtype=jnp.bfloat16))(x_small)
    jax.block_until_ready(y_bf16)
    assert jnp.allclose(y_bf16, ref_small, atol=2e-2, rtol=2e-2), (
        "bf16 mismatch vs conv reference")

    print("KERNEL_OK")
</pallas_src>

<mosaic_0001>
module attributes {stable_mosaic.version = 11 : i64} {
  func.func @_fused_embed_kernel(%arg0: i32, %arg1: memref<128x64xf32, #tpu.memory_space<vmem>>, %arg2: memref<16x4xf32, #tpu.memory_space<vmem>>, %arg3: memref<1x4xf32, #tpu.memory_space<vmem>>, %arg4: memref<16x8xf32, #tpu.memory_space<vmem>>, %arg5: memref<1x8xf32, #tpu.memory_space<vmem>>, %arg6: memref<32x16xf32, #tpu.memory_space<vmem>>, %arg7: memref<1x16xf32, #tpu.memory_space<vmem>>, %arg8: memref<64x32xf32, #tpu.memory_space<vmem>>, %arg9: memref<1x32xf32, #tpu.memory_space<vmem>>, %arg10: memref<8x32xf32, #tpu.memory_space<vmem>>) attributes {dimension_semantics = [#tpu.dimension_semantics<parallel>], iteration_bounds = array<i64: 1>, scalar_prefetch = 0 : i64, scratch_operands = 0 : i64, tpu.core_type = #tpu.core_type<tc>, window_params = [{transform_indices = @transform_0, window_bounds = array<i64: 128, 64>}, {pipeline_mode = #tpu.pipeline_mode<synchronous>, transform_indices = @transform_1, window_bounds = array<i64: 16, 4>}, {pipeline_mode = #tpu.pipeline_mode<synchronous>, transform_indices = @transform_2, window_bounds = array<i64: 1, 4>}, {pipeline_mode = #tpu.pipeline_mode<synchronous>, transform_indices = @transform_3, window_bounds = array<i64: 16, 8>}, {pipeline_mode = #tpu.pipeline_mode<synchronous>, transform_indices = @transform_4, window_bounds = array<i64: 1, 8>}, {pipeline_mode = #tpu.pipeline_mode<synchronous>, transform_indices = @transform_5, window_bounds = array<i64: 32, 16>}, {pipeline_mode = #tpu.pipeline_mode<synchronous>, transform_indices = @transform_6, window_bounds = array<i64: 1, 16>}, {pipeline_mode = #tpu.pipeline_mode<synchronous>, transform_indices = @transform_7, window_bounds = array<i64: 64, 32>}, {pipeline_mode = #tpu.pipeline_mode<synchronous>, transform_indices = @transform_8, window_bounds = array<i64: 1, 32>}, {transform_indices = @transform_9, window_bounds = array<i64: 8, 32>}]} {
    %c0 = arith.constant 0 : index
    %c0_0 = arith.constant 0 : index
    %0 = vector.load %arg1[%c0, %c0_0] : memref<128x64xf32, #tpu.memory_space<vmem>>, vector<128x64xf32>
    %1 = vector.extract_strided_slice %0 {offsets = [0, 0], sizes = [128, 16], strides = [1, 1]} : vector<128x64xf32> to vector<128x16xf32>
    %c0_1 = arith.constant 0 : index
    %c0_2 = arith.constant 0 : index
    %2 = vector.load %arg2[%c0_1, %c0_2] : memref<16x4xf32, #tpu.memory_space<vmem>>, vector<16x4xf32>
    %cst = arith.constant dense<0.000000e+00> : vector<128x4xf32>
    %3 = tpu.matmul %1, %2, %cst {dimension_numbers = #tpu.dot_dimension_numbers<[1], [0], [0], [1], [0, 0, 1, 1], [], []>} : vector<128x16xf32>, vector<16x4xf32>, vector<128x4xf32> -> vector<128x4xf32>
    %c0_3 = arith.constant 0 : index
    %c0_4 = arith.constant 0 : index
    %4 = vector.load %arg3[%c0_3, %c0_4] : memref<1x4xf32, #tpu.memory_space<vmem>>, vector<1x4xf32>
    %5 = vector.broadcast %4 : vector<1x4xf32> to vector<128x4xf32>
    %6 = arith.addf %3, %5 : vector<128x4xf32>
    %7 = vector.extract_strided_slice %0 {offsets = [0, 16], sizes = [128, 16], strides = [1, 1]} : vector<128x64xf32> to vector<128x16xf32>
    %c0_5 = arith.constant 0 : index
    %c0_6 = arith.constant 0 : index
    %8 = vector.load %arg2[%c0_5, %c0_6] : memref<16x4xf32, #tpu.memory_space<vmem>>, vector<16x4xf32>
    %cst_7 = arith.constant dense<0.000000e+00> : vector<128x4xf32>
    %9 = tpu.matmul %7, %8, %cst_7 {dimension_numbers = #tpu.dot_dimension_numbers<[1], [0], [0], [1], [0, 0, 1, 1], [], []>} : vector<128x16xf32>, vector<16x4xf32>, vector<128x4xf32> -> vector<128x4xf32>
    %c0_8 = arith.constant 0 : index
    %c0_9 = arith.constant 0 : index
    %10 = vector.load %arg3[%c0_8, %c0_9] : memref<1x4xf32, #tpu.memory_space<vmem>>, vector<1x4xf32>
    %11 = vector.broadcast %10 : vector<1x4xf32> to vector<128x4xf32>
    %12 = arith.addf %9, %11 : vector<128x4xf32>
    %13 = vector.extract_strided_slice %0 {offsets = [0, 32], sizes = [128, 16], strides = [1, 1]} : vector<128x64xf32> to vector<128x16xf32>
    %c0_10 = arith.constant 0 : index
    %c0_11 = arith.constant 0 : index
    %14 = vector.load %arg2[%c0_10, %c0_11] : memref<16x4xf32, #tpu.memory_space<vmem>>, vector<16x4xf32>
    %cst_12 = arith.constant dense<0.000000e+00> : vector<128x4xf32>
    %15 = tpu.matmul %13, %14, %cst_12 {dimension_numbers = #tpu.dot_dimension_numbers<[1], [0], [0], [1], [0, 0, 1, 1], [], []>} : vector<128x16xf32>, vector<16x4xf32>, vector<128x4xf32> -> vector<128x4xf32>
    %c0_13 = arith.constant 0 : index
    %c0_14 = arith.constant 0 : index
    %16 = vector.load %arg3[%c0_13, %c0_14] : memref<1x4xf32, #tpu.memory_space<vmem>>, vector<1x4xf32>
    %17 = vector.broadcast %16 : vector<1x4xf32> to vector<128x4xf32>
    %18 = arith.addf %15, %17 : vector<128x4xf32>
    %19 = vector.extract_strided_slice %0 {offsets = [0, 48], sizes = [128, 16], strides = [1, 1]} : vector<128x64xf32> to vector<128x16xf32>
    %c0_15 = arith.constant 0 : index
    %c0_16 = arith.constant 0 : index
    %20 = vector.load %arg2[%c0_15, %c0_16] : memref<16x4xf32, #tpu.memory_space<vmem>>, vector<16x4xf32>
    %cst_17 = arith.constant dense<0.000000e+00> : vector<128x4xf32>
    %21 = tpu.matmul %19, %20, %cst_17 {dimension_numbers = #tpu.dot_dimension_numbers<[1], [0], [0], [1], [0, 0, 1, 1], [], []>} : vector<128x16xf32>, vector<16x4xf32>, vector<128x4xf32> -> vector<128x4xf32>
    %c0_18 = arith.constant 0 : index
    %c0_19 = arith.constant 0 : index
    %22 = vector.load %arg3[%c0_18, %c0_19] : memref<1x4xf32, #tpu.memory_space<vmem>>, vector<1x4xf32>
    %23 = vector.broadcast %22 : vector<1x4xf32> to vector<128x4xf32>
    %24 = arith.addf %21, %23 : vector<128x4xf32>
    %25 = tpu.concatenate %6, %12, %18, %24 in 1 : vector<128x4xf32>, vector<128x4xf32>, vector<128x4xf32>, vector<128x4xf32> -> vector<128x16xf32>
    %c0_20 = arith.constant 0 : index
    %c0_21 = arith.constant 0 : index
    %26 = vector.load %arg4[%c0_20, %c0_21] : memref<16x8xf32, #tpu.memory_space<vmem>>, vector<16x8xf32>
    %cst_22 = arith.constant dense<0.000000e+00> : vector<128x8xf32>
    %27 = tpu.matmul %25, %26, %cst_22 {dimension_numbers = #tpu.dot_dimension_numbers<[1], [0], [0], [1], [0, 0, 1, 1], [], []>} : vector<128x16xf32>, vector<16x8xf32>, vector<128x8xf32> -> vector<128x8xf32>
    %c0_23 = arith.constant 0 : index
    %c0_24 = arith.constant 0 : index
    %28 = vector.load %arg5[%c0_23, %c0_24] : memref<1x8xf32, #tpu.memory_space<vmem>>, vector<1x8xf32>
    %29 = vector.broadcast %28 : vector<1x8xf32> to vector<128x8xf32>
    %30 = arith.addf %27, %29 : vector<128x8xf32>
    %31 = vector.extract_strided_slice %30 {offsets = [0, 0], sizes = [32, 8], strides = [1, 1]} : vector<128x8xf32> to vector<32x8xf32>
    %32 = vector.extract_strided_slice %30 {offsets = [32, 0], sizes = [32, 8], strides = [1, 1]} : vector<128x8xf32> to vector<32x8xf32>
    %33 = vector.extract_strided_slice %30 {offsets = [64, 0], sizes = [32, 8], strides = [1, 1]} : vector<128x8xf32> to vector<32x8xf32>
    %34 = vector.extract_strided_slice %30 {offsets = [96, 0], sizes = [32, 8], strides = [1, 1]} : vector<128x8xf32> to vector<32x8xf32>
    %35 = tpu.concatenate %31, %32, %33, %34 in 1 : vector<32x8xf32>, vector<32x8xf32>, vector<32x8xf32>, vector<32x8xf32> -> vector<32x32xf32>
    %c0_25 = arith.constant 0 : index
    %c0_26 = arith.constant 0 : index
    %36 = vector.load %arg6[%c0_25, %c0_26] : memref<32x16xf32, #tpu.memory_space<vmem>>, vector<32x16xf32>
    %cst_27 = arith.constant dense<0.000000e+00> : vector<32x16xf32>
    %37 = tpu.matmul %35, %36, %cst_27 {dimension_numbers = #tpu.dot_dimension_numbers<[1], [0], [0], [1], [0, 0, 1, 1], [], []>} : vector<32x32xf32>, vector<32x16xf32>, vector<32x16xf32> -> vector<32x16xf32>
    %c0_28 = arith.constant 0 : index
    %c0_29 = arith.constant 0 : index
    %38 = vector.load %arg7[%c0_28, %c0_29] : memref<1x16xf32, #tpu.memory_space<vmem>>, vector<1x16xf32>
    %39 = vector.broadcast %38 : vector<1x16xf32> to vector<32x16xf32>
    %40 = arith.addf %37, %39 : vector<32x16xf32>
    %41 = vector.extract_strided_slice %40 {offsets = [0, 0], sizes = [8, 16], strides = [1, 1]} : vector<32x16xf32> to vector<8x16xf32>
    %42 = vector.extract_strided_slice %40 {offsets = [8, 0], sizes = [8, 16], strides = [1, 1]} : vector<32x16xf32> to vector<8x16xf32>
    %43 = vector.extract_strided_slice %40 {offsets = [16, 0], sizes = [8, 16], strides = [1, 1]} : vector<32x16xf32> to vector<8x16xf32>
    %44 = vector.extract_strided_slice %40 {offsets = [24, 0], sizes = [8, 16], strides = [1, 1]} : vector<32x16xf32> to vector<8x16xf32>
    %45 = tpu.concatenate %41, %42, %43, %44 in 1 : vector<8x16xf32>, vector<8x16xf32>, vector<8x16xf32>, vector<8x16xf32> -> vector<8x64xf32>
    %c0_30 = arith.constant 0 : index
    %c0_31 = arith.constant 0 : index
    %46 = vector.load %arg8[%c0_30, %c0_31] : memref<64x32xf32, #tpu.memory_space<vmem>>, vector<64x32xf32>
    %cst_32 = arith.constant dense<0.000000e+00> : vector<8x32xf32>
    %47 = tpu.matmul %45, %46, %cst_32 {dimension_numbers = #tpu.dot_dimension_numbers<[1], [0], [0], [1], [0, 0, 1, 1], [], []>} : vector<8x64xf32>, vector<64x32xf32>, vector<8x32xf32> -> vector<8x32xf32>
    %c0_33 = arith.constant 0 : index
    %c0_34 = arith.constant 0 : index
    %48 = vector.load %arg9[%c0_33, %c0_34] : memref<1x32xf32, #tpu.memory_space<vmem>>, vector<1x32xf32>
    %49 = vector.broadcast %48 : vector<1x32xf32> to vector<8x32xf32>
    %50 = arith.addf %47, %49 : vector<8x32xf32>
    %c0_35 = arith.constant 0 : index
    %c0_36 = arith.constant 0 : index
    %51 = vector.load %arg10[%c0_35, %c0_36] : memref<8x32xf32, #tpu.memory_space<vmem>>, vector<8x32xf32>
    tpu.vector_store %arg10[%c0_35, %c0_36], %50 {strides = array<i32>} : memref<8x32xf32, #tpu.memory_space<vmem>>, vector<8x32xf32>,
    return
  }
  func.func @transform_0(%arg0: i32) -> (i32, i32) {
    %c0_i32 = arith.constant 0 : i32
    %c0_i32_0 = arith.constant 0 : i32
    return %arg0, %c0_i32 : i32, i32
  }
  func.func @transform_1(%arg0: i32) -> (i32, i32) {
    %c0_i32 = arith.constant 0 : i32
    %c0_i32_0 = arith.constant 0 : i32
    %c0_i32_1 = arith.constant 0 : i32
    return %c0_i32, %c0_i32_0 : i32, i32
  }
  func.func @transform_2(%arg0: i32) -> (i32, i32) {
    %c0_i32 = arith.constant 0 : i32
    %c0_i32_0 = arith.constant 0 : i32
    %c0_i32_1 = arith.constant 0 : i32
    return %c0_i32, %c0_i32_0 : i32, i32
  }
  func.func @transform_3(%arg0: i32) -> (i32, i32) {
    %c0_i32 = arith.constant 0 : i32
    %c0_i32_0 = arith.constant 0 : i32
    %c0_i32_1 = arith.constant 0 : i32
    return %c0_i32, %c0_i32_0 : i32, i32
  }
  func.func @transform_4(%arg0: i32) -> (i32, i32) {
    %c0_i32 = arith.constant 0 : i32
    %c0_i32_0 = arith.constant 0 : i32
    %c0_i32_1 = arith.constant 0 : i32
    return %c0_i32, %c0_i32_0 : i32, i32
  }
  func.func @transform_5(%arg0: i32) -> (i32, i32) {
    %c0_i32 = arith.constant 0 : i32
    %c0_i32_0 = arith.constant 0 : i32
    %c0_i32_1 = arith.constant 0 : i32
    return %c0_i32, %c0_i32_0 : i32, i32
  }
  func.func @transform_6(%arg0: i32) -> (i32, i32) {
    %c0_i32 = arith.constant 0 : i32
    %c0_i32_0 = arith.constant 0 : i32
    %c0_i32_1 = arith.constant 0 : i32
    return %c0_i32, %c0_i32_0 : i32, i32
  }
  func.func @transform_7(%arg0: i32) -> (i32, i32) {
    %c0_i32 = arith.constant 0 : i32
    %c0_i32_0 = arith.constant 0 : i32
    %c0_i32_1 = arith.constant 0 : i32
    return %c0_i32, %c0_i32_0 : i32, i32
  }
  func.func @transform_8(%arg0: i32) -> (i32, i32) {
    %c0_i32 = arith.constant 0 : i32
    %c0_i32_0 = arith.constant 0 : i32
    %c0_i32_1 = arith.constant 0 : i32
    return %c0_i32, %c0_i32_0 : i32, i32
  }
  func.func @transform_9(%arg0: i32) -> (i32, i32) {
    %c0_i32 = arith.constant 0 : i32
    %c0_i32_0 = arith.constant 0 : i32
    return %arg0, %c0_i32 : i32, i32
  }
}

</mosaic_0001>

<llo_original>
// kernel: _lambda_.1
$region0: #{_lambda_.1}
  #allocation0 [shape = 'u32[]', space=smem, size = 0x4, offset = 0x4, fixed_abs, tag = 'smem constant byte address 0x4 - core index']
  #allocation1 [shape = 'u32[144,128]{1,0:T(1,128)}', space=vmem, size = 0x12000, scoped, tag = 'internal scratch']
  %s0 = inlined_call_operand.vmem [shape: f32[128,64], index: 0, kind: input, shape index: {}]
  %s1 = inlined_call_operand.vmem [shape: f32[16,4], index: 1, kind: input, shape index: {}]
  %s2 = inlined_call_operand.vmem [shape: f32[1,4], index: 2, kind: input, shape index: {}]
  %s3 = inlined_call_operand.vmem [shape: f32[16,8], index: 3, kind: input, shape index: {}]
  %s4 = inlined_call_operand.vmem [shape: f32[1,8], index: 4, kind: input, shape index: {}]
  %s5 = inlined_call_operand.vmem [shape: f32[32,16], index: 5, kind: input, shape index: {}]
  %s6 = inlined_call_operand.vmem [shape: f32[1,16], index: 6, kind: input, shape index: {}]
  %s7 = inlined_call_operand.vmem [shape: f32[64,32], index: 7, kind: input, shape index: {}]
  %s8 = inlined_call_operand.vmem [shape: f32[1,32], index: 8, kind: input, shape index: {}]
  %s9 = inlined_call_operand.vmem [shape: f32[8,32], index: 9, kind: output, shape index: {}]
  %s10 = sld [smem:[#allocation0]]
  $region46: #{_lambda_.1} parent=0
    _
  %s12 = ssub.s32 1, %s10
  %s13 = scalar_select 0, %s12, %s10
  // Predicated region
  $region2: #{_lambda_.1} parent=0 // pred_check
    _
  $region3: #{_lambda_.1} parent=0 // pred_check_branch
    %15 = sbr.rel (0) target = $region5
  $region4: #{_lambda_.1} parent=0 // pred_region
    _
  $region5: #{_lambda_.1} parent=0 // pred_fallthru
    _
  // Predicated region
  $region6: #{_lambda_.1} parent=0 // pred_check
    _
  $region7: #{_lambda_.1} parent=0 // pred_check_branch
    %17 = sbr.rel (0) target = $region9
  $region8: #{_lambda_.1} parent=0 // pred_region
    _
  $region9: #{_lambda_.1} parent=0 // pred_fallthru
    _
  // Predicated region
  $region10: #{_lambda_.1} parent=0 // pred_check
    _
  $region11: #{_lambda_.1} parent=0 // pred_check_branch
    %19 = sbr.rel (0) target = $region13
  $region12: #{_lambda_.1} parent=0 // pred_region
    _
  $region13: #{_lambda_.1} parent=0 // pred_fallthru
    _
  // Predicated region
  $region14: #{_lambda_.1} parent=0 // pred_check
    _
  $region15: #{_lambda_.1} parent=0 // pred_check_branch
    %21 = sbr.rel (0) target = $region17
  $region16: #{_lambda_.1} parent=0 // pred_region
    _
  $region17: #{_lambda_.1} parent=0 // pred_fallthru
    _
  // Predicated region
  $region18: #{_lambda_.1} parent=0 // pred_check
    _
  $region19: #{_lambda_.1} parent=0 // pred_check_branch
    %23 = sbr.rel (0) target = $region21
  $region20: #{_lambda_.1} parent=0 // pred_region
    _
  $region21: #{_lambda_.1} parent=0 // pred_fallthru
    _
  // Predicated region
  $region22: #{_lambda_.1} parent=0 // pred_check
    _
  $region23: #{_lambda_.1} parent=0 // pred_check_branch
    %25 = sbr.rel (0) target = $region25
  $region24: #{_lambda_.1} parent=0 // pred_region
    _
  $region25: #{_lambda_.1} parent=0 // pred_fallthru
    _
  // Predicated region
  $region26: #{_lambda_.1} parent=0 // pred_check
    _
  $region27: #{_lambda_.1} parent=0 // pred_check_branch
    %27 = sbr.rel (0) target = $region29
  $region28: #{_lambda_.1} parent=0 // pred_region
    _
  $region29: #{_lambda_.1} parent=0 // pred_fallthru
    _
  // Predicated region
  $region30: #{_lambda_.1} parent=0 // pred_check
    _
  $region31: #{_lambda_.1} parent=0 // pred_check_branch
    %29 = sbr.rel (0) target = $region33
  $region32: #{_lambda_.1} parent=0 // pred_region
    _
  $region33: #{_lambda_.1} parent=0 // pred_fallthru
    _
  // Predicated region
  $region34: #{_lambda_.1} parent=0 // pred_check
    _
  $region35: #{_lambda_.1} parent=0 // pred_check_branch
    %31 = sbr.rel (0) target = $region37
  $region36: #{_lambda_.1} parent=0 // pred_region
    _
  $region37: #{_lambda_.1} parent=0 // pred_fallthru
    _
  %v32 = vld [vmem:[%s0] sm:$0xff]
  %v33 = vld [vmem:[%s0 + $0x8] sm:$0xff]
  %v34 = vld [vmem:[%s0 + $0x10] sm:$0xff]
  %v35 = vld [vmem:[%s0 + $0x18] sm:$0xff]
  %v36 = vld [vmem:[%s0 + $0x20] sm:$0xff]
  %v37 = vld [vmem:[%s0 + $0x28] sm:$0xff]
  %v38 = vld [vmem:[%s0 + $0x30] sm:$0xff]
  %v39 = vld [vmem:[%s0 + $0x38] sm:$0xff]
  %v40 = vld [vmem:[%s0 + $0x40] sm:$0xff]
  %v41 = vld [vmem:[%s0 + $0x48] sm:$0xff]
  %v42 = vld [vmem:[%s0 + $0x50] sm:$0xff]
  %v43 = vld [vmem:[%s0 + $0x58] sm:$0xff]
  %v44 = vld [vmem:[%s0 + $0x60] sm:$0xff]
  %v45 = vld [vmem:[%s0 + $0x68] sm:$0xff]
  %v46 = vld [vmem:[%s0 + $0x70] sm:$0xff]
  %v47 = vld [vmem:[%s0 + $0x78] sm:$0xff]
  %v48 = vld [vmem:[%s1] sm:$0xff]
  %v49 = vld [vmem:[%s1 + $0x8] sm:$0xff]
  %v50 = vld [vmem:[%s2] sm:$0x1]
  %v52 = vlaneseq
  %v53 = vshrl.u32 %v52, 7
  %v54 = vsub.s32 0, %v53
  %v55 = vrot.slane %v50, %v54
  %vm57 = vcmask 130048
  %v59 = vsel %vm57, %v32, 0
  %v62 = vsel %vm57, %v33, 0
  %v65 = vsel %vm57, %v34, 0
  %v68 = vsel %vm57, %v35, 0
  %v71 = vsel %vm57, %v36, 0
  %v74 = vsel %vm57, %v37, 0
  %v77 = vsel %vm57, %v38, 0
  %v80 = vsel %vm57, %v39, 0
  %v83 = vsel %vm57, %v40, 0
  %v86 = vsel %vm57, %v41, 0
  %v89 = vsel %vm57, %v42, 0
  %v92 = vsel %vm57, %v43, 0
  %v95 = vsel %vm57, %v44, 0
  %v98 = vsel %vm57, %v45, 0
  %v101 = vsel %vm57, %v46, 0
  %v104 = vsel %vm57, %v47, 0
  %106 = vmatprep.subr.mxu0 0.0
  %107 = vmatpush1.msra.mxu0 %v48
  %108 = vmatprep.subr.mxu0 0.0
  %109 = vmatpush1.msra.mxu0 %v49
  %110 = vmatprep.subr.mxu0 0.0
  %111 = vmatpush1.msra.mxu0 0.0
  %112 = vmatprep.subr.mxu0 0.0
  %113 = vmatpush1.msra.mxu0 0.0
  %114 = vmatprep.subr.mxu0 0.0
  %115 = vmatpush1.msra.mxu0 0.0
  %116 = vmatprep.subr.mxu0 0.0
  %117 = vmatpush1.msra.mxu0 0.0
  %118 = vmatprep.subr.mxu0 0.0
  %119 = vmatpush1.msra.mxu0 0.0
  %120 = vmatprep.subr.mxu0 0.0
  %121 = vmatpush1.msra.mxu0 0.0
  %122 = vmatprep.subr.mxu0 0.0
  %123 = vmatpush1.msra.mxu0 0.0
  %124 = vmatprep.subr.mxu0 0.0
  %125 = vmatpush1.msra.mxu0 0.0
  %126 = vmatprep.subr.mxu0 0.0
  %127 = vmatpush1.msra.mxu0 0.0
  %128 = vmatprep.subr.mxu0 0.0
  %129 = vmatpush1.msra.mxu0 0.0
  %130 = vmatprep.subr.mxu0 0.0
  %131 = vmatpush1.msra.mxu0 0.0
  %132 = vmatprep.subr.mxu0 0.0
  %133 = vmatpush1.msra.mxu0 0.0
  %134 = vmatprep.subr.mxu0 0.0
  %135 = vmatpush1.msra.mxu0 0.0
  %136 = vmatprep.subr.mxu0 0.0
  %137 = vmatpush1.msra.mxu0 0.0
  %138 = vmatprep.subr.mxu0 0.0
  %139 = vmatpush1.msra.mxu0 0.0
  %140 = vmatprep.subr.mxu0 0.0
  %141 = vmatpush1.msra.mxu0 0.0
  %142 = vmatprep.subr.mxu0 0.0
  %143 = vmatpush1.msra.mxu0 0.0
  %144 = vmatprep.subr.mxu0 0.0
  %145 = vmatpush1.msra.mxu0 0.0
  %146 = vmatprep.subr.mxu0 0.0
  %147 = vmatpush1.msra.mxu0 0.0
  %148 = vmatprep.subr.mxu0 0.0
  %149 = vmatpush1.msra.mxu0 0.0
  %150 = vmatprep.subr.mxu0 0.0
  %151 = vmatpush1.msra.mxu0 0.0
  %152 = vmatprep.subr.mxu0 0.0
  %153 = vmatpush1.msra.mxu0 0.0
  %154 = vmatprep.subr.mxu0 0.0
  %155 = vmatpush1.msra.mxu0 0.0
  %156 = vmatprep.subr.mxu0 0.0
  %157 = vmatpush1.msra.mxu0 0.0
  %158 = vmatprep.subr.mxu0 0.0
  %159 = vmatpush1.msra.mxu0 0.0
  %160 = vmatprep.subr.mxu0 0.0
  %161 = vmatpush1.msra.mxu0 0.0
  %162 = vmatprep.subr.mxu0 0.0
  %163 = vmatpush1.msra.mxu0 0.0
  %164 = vmatprep.subr.mxu0 0.0
  %165 = vmatpush1.msra.mxu0 0.0
  %166 = vmatprep.subr.mxu0 0.0
  %167 = vmatpush1.msra.mxu0 0.0
  %168 = vmatprep.subr.mxu0 0.0
  %169 = vmatpush1.msra.mxu0 0.0
  %170 = vmatprep.mubr.f32.mxu0 0.0
  %171 = vmatmul.mubr.f32.gmra.mrb[0].mxu0 %v59
  %v172 = vpop.f32.mrb[0].mxu0
  %v173 = vadd.f32 %v55, %v172
  %v174 = vpop.f32.mrb[0].mxu0
  %175 = vmatprep.mubr.f32.mxu0 0.0
  %176 = vmatmul.mubr.f32.gmra.mrb[0].mxu0 %v62
  %v177 = vpop.f32.mrb[0].mxu0
  %v178 = vadd.f32 %v55, %v177
  %v179 = vpop.f32.mrb[0].mxu0
  %180 = vmatprep.mubr.f32.mxu0 0.0
  %181 = vmatmul.mubr.f32.gmra.mrb[0].mxu0 %v65
  %v182 = vpop.f32.mrb[0].mxu0
  %v183 = vadd.f32 %v55, %v182
  %v184 = vpop.f32.mrb[0].mxu0
  %185 = vmatprep.mubr.f32.mxu0 0.0
  %186 = vmatmul.mubr.f32.gmra.mrb[0].mxu0 %v68
  %v187 = vpop.f32.mrb[0].mxu0
  %v188 = vadd.f32 %v55, %v187
  %v189 = vpop.f32.mrb[0].mxu0
  %190 = vmatprep.mubr.f32.mxu0 0.0
  %191 = vmatmul.mubr.f32.gmra.mrb[0].mxu0 %v71
  %v192 = vpop.f32.mrb[0].mxu0
  %v193 = vadd.f32 %v55, %v192
  %v194 = vpop.f32.mrb[0].mxu0
  %195 = vmatprep.mubr.f32.mxu0 0.0
  %196 = vmatmul.mubr.f32.gmra.mrb[0].mxu0 %v74
  %v197 = vpop.f32.mrb[0].mxu0
  %v198 = vadd.f32 %v55, %v197
  %v199 = vpop.f32.mrb[0].mxu0
  %200 = vmatprep.mubr.f32.mxu0 0.0
  %201 = vmatmul.mubr.f32.gmra.mrb[0].mxu0 %v77
  %v202 = vpop.f32.mrb[0].mxu0
  %v203 = vadd.f32 %v55, %v202
  %v204 = vpop.f32.mrb[0].mxu0
  %205 = vmatprep.mubr.f32.mxu0 0.0
  %206 = vmatmul.mubr.f32.gmra.mrb[0].mxu0 %v80
  %v207 = vpop.f32.mrb[0].mxu0
  %v208 = vadd.f32 %v55, %v207
  %v209 = vpop.f32.mrb[0].mxu0
  %210 = vmatprep.mubr.f32.mxu0 0.0
  %211 = vmatmul.mubr.f32.gmra.mrb[0].mxu0 %v83
  %v212 = vpop.f32.mrb[0].mxu0
  %v213 = vadd.f32 %v55, %v212
  %v214 = vpop.f32.mrb[0].mxu0
  %215 = vmatprep.mubr.f32.mxu0 0.0
  %216 = vmatmul.mubr.f32.gmra.mrb[0].mxu0 %v86
  %v217 = vpop.f32.mrb[0].mxu0
  %v218 = vadd.f32 %v55, %v217
  %v219 = vpop.f32.mrb[0].mxu0
  %220 = vmatprep.mubr.f32.mxu0 0.0
  %221 = vmatmul.mubr.f32.gmra.mrb[0].mxu0 %v89
  %v222 = vpop.f32.mrb[0].mxu0
  %v223 = vadd.f32 %v55, %v222
  %v224 = vpop.f32.mrb[0].mxu0
  %225 = vmatprep.mubr.f32.mxu0 0.0
  %226 = vmatmul.mubr.f32.gmra.mrb[0].mxu0 %v92
  %v227 = vpop.f32.mrb[0].mxu0
  %v228 = vadd.f32 %v55, %v227
  %v229 = vpop.f32.mrb[0].mxu0
  %230 = vmatprep.mubr.f32.mxu0 0.0
  %231 = vmatmul.mubr.f32.gmra.mrb[0].mxu0 %v95
  %v232 = vpop.f32.mrb[0].mxu0
  %v233 = vadd.f32 %v55, %v232
  %v234 = vpop.f32.mrb[0].mxu0
  %235 = vmatprep.mubr.f32.mxu0 0.0
  %236 = vmatmul.mubr.f32.gmra.mrb[0].mxu0 %v98
  %v237 = vpop.f32.mrb[0].mxu0
  %v238 = vadd.f32 %v55, %v237
  %v239 = vpop.f32.mrb[0].mxu0
  %240 = vmatprep.mubr.f32.mxu0 0.0
  %241 = vmatmul.mubr.f32.gmra.mrb[0].mxu0 %v101
  %v242 = vpop.f32.mrb[0].mxu0
  %v243 = vadd.f32 %v55, %v242
  %v244 = vpop.f32.mrb[0].mxu0
  %245 = vmatprep.mubr.f32.mxu0 0.0
  %246 = vmatmul.mubr.f32.gmra.mrb[0].mxu0 %v104
  %v247 = vpop.f32.mrb[0].mxu0
  %v248 = vadd.f32 %v55, %v247
  %v249 = vpop.f32.mrb[0].mxu0
  %250 = vdwg.mxu0
  %251 = vrot.lane.b32.xlu0 %v32, 112
  %v252 = vpop.permute.xlu0 %251
  %253 = vrot.lane.b32.xlu0 %v33, 112
  %v254 = vpop.permute.xlu0 %253
  %255 = vrot.lane.b32.xlu0 %v34, 112
  %v256 = vpop.permute.xlu0 %255
  %257 = vrot.lane.b32.xlu0 %v35, 112
  %v258 = vpop.permute.xlu0 %257
  %259 = vrot.lane.b32.xlu0 %v36, 112
  %v260 = vpop.permute.xlu0 %259
  %261 = vrot.lane.b32.xlu0 %v37, 112
  %v262 = vpop.permute.xlu0 %261
  %263 = vrot.lane.b32.xlu0 %v38, 112
  %v264 = vpop.permute.xlu0 %263
  %265 = vrot.lane.b32.xlu0 %v39, 112
  %v266 = vpop.permute.xlu0 %265
  %267 = vrot.lane.b32.xlu0 %v40, 112
  %v268 = vpop.permute.xlu0 %267
  %269 = vrot.lane.b32.xlu0 %v41, 112
  %v270 = vpop.permute.xlu0 %269
  %271 = vrot.lane.b32.xlu0 %v42, 112
  %v272 = vpop.permute.xlu0 %271
  %273 = vrot.lane.b32.xlu0 %v43, 112
  %v274 = vpop.permute.xlu0 %273
  %275 = vrot.lane.b32.xlu0 %v44, 112
  %v276 = vpop.permute.xlu0 %275
  %277 = vrot.lane.b32.xlu0 %v45, 112
  %v278 = vpop.permute.xlu0 %277
  %279 = vrot.lane.b32.xlu0 %v46, 112
  %v280 = vpop.permute.xlu0 %279
  %281 = vrot.lane.b32.xlu0 %v47, 112
  %v282 = vpop.permute.xlu0 %281
  %v283 = vsel %vm57, %v252, 0
  %v285 = vsel %vm57, %v254, 0
  %v287 = vsel %vm57, %v256, 0
  %v289 = vsel %vm57, %v258, 0
  %v291 = vsel %vm57, %v260, 0
  %v293 = vsel %vm57, %v262, 0
  %v295 = vsel %vm57, %v264, 0
  %v297 = vsel %vm57, %v266, 0
  %v299 = vsel %vm57, %v268, 0
  %v301 = vsel %vm57, %v270, 0
  %v303 = vsel %vm57, %v272, 0
  %v305 = vsel %vm57, %v274, 0
  %v307 = vsel %vm57, %v276, 0
  %v309 = vsel %vm57, %v278, 0
  %v311 = vsel %vm57, %v280, 0
  %v313 = vsel %vm57, %v282, 0
  %315 = vmatprep.subr.mxu0 0.0
  %316 = vmatpush1.msra.mxu0 %v48
  %317 = vmatprep.subr.mxu0 0.0
  %318 = vmatpush1.msra.mxu0 %v49
  %319 = vmatprep.subr.mxu0 0.0
  %320 = vmatpush1.msra.mxu0 0.0
  %321 = vmatprep.subr.mxu0 0.0
  %322 = vmatpush1.msra.mxu0 0.0
  %323 = vmatprep.subr.mxu0 0.0
  %324 = vmatpush1.msra.mxu0 0.0
  %325 = vmatprep.subr.mxu0 0.0
  %326 = vmatpush1.msra.mxu0 0.0
  %327 = vmatprep.subr.mxu0 0.0
  %328 = vmatpush1.msra.mxu0 0.0
  %329 = vmatprep.subr.mxu0 0.0
  %330 = vmatpush1.msra.mxu0 0.0
  %331 = vmatprep.subr.mxu0 0.0
  %332 = vmatpush1.msra.mxu0 0.0
  %333 = vmatprep.subr.mxu0 0.0
  %334 = vmatpush1.msra.mxu0 0.0
  %335 = vmatprep.subr.mxu0 0.0
  %336 = vmatpush1.msra.mxu0 0.0
  %337 = vmatprep.subr.mxu0 0.0
  %338 = vmatpush1.msra.mxu0 0.0
  %339 = vmatprep.subr.mxu0 0.0
  %340 = vmatpush1.msra.mxu0 0.0
  %341 = vmatprep.subr.mxu0 0.0
  %342 = vmatpush1.msra.mxu0 0.0
  %343 = vmatprep.subr.mxu0 0.0
  %344 = vmatpush1.msra.mxu0 0.0
  %345 = vmatprep.subr.mxu0 0.0
  %346 = vmatpush1.msra.mxu0 0.0
  %347 = vmatprep.subr.mxu0 0.0
  %348 = vmatpush1.msra.mxu0 0.0
  %349 = vmatprep.subr.mxu0 0.0
  %350 = vmatpush1.msra.mxu0 0.0
  %351 = vmatprep.subr.mxu0 0.0
  %352 = vmatpush1.msra.mxu0 0.0
  %353 = vmatprep.subr.mxu0 0.0
  %354 = vmatpush1.msra.mxu0 0.0
  %355 = vmatprep.subr.mxu0 0.0
  %356 = vmatpush1.msra.mxu0 0.0
  %357 = vmatprep.subr.mxu0 0.0
  %358 = vmatpush1.msra.mxu0 0.0
  %359 = vmatprep.subr.mxu0 0.0
  %360 = vmatpush1.msra.mxu0 0.0
  %361 = vmatprep.subr.mxu0 0.0
  %362 = vmatpush1.msra.mxu0 0.0
  %363 = vmatprep.subr.mxu0 0.0
  %364 = vmatpush1.msra.mxu0 0.0
  %365 = vmatprep.subr.mxu0 0.0
  %366 = vmatpush1.msra.mxu0 0.0
  %367 = vmatprep.subr.mxu0 0.0
  %368 = vmatpush1.msra.mxu0 0.0
  %369 = vmatprep.subr.mxu0 0.0
  %370 = vmatpush1.msra.mxu0 0.0
  %371 = vmatprep.subr.mxu0 0.0
  %372 = vmatpush1.msra.mxu0 0.0
  %373 = vmatprep.subr.mxu0 0.0
  %374 = vmatpush1.msra.mxu0 0.0
  %375 = vmatprep.subr.mxu0 0.0
  %376 = vmatpush1.msra.mxu0 0.0
  %377 = vmatprep.subr.mxu0 0.0
  %378 = vmatpush1.msra.mxu0 0.0
  %379 = vmatprep.mubr.f32.mxu0 0.0
  %380 = vmatmul.mubr.f32.gmra.mrb[0].mxu0 %v283
  %v381 = vpop.f32.mrb[0].mxu0
  %v382 = vadd.f32 %v55, %v381
  %v383 = vpop.f32.mrb[0].mxu0
  %384 = vmatprep.mubr.f32.mxu0 0.0
  %385 = vmatmul.mubr.f32.gmra.mrb[0].mxu0 %v285
  %v386 = vpop.f32.mrb[0].mxu0
  %v387 = vadd.f32 %v55, %v386
  %v388 = vpop.f32.mrb[0].mxu0
  %389 = vmatprep.mubr.f32.mxu0 0.0
  %390 = vmatmul.mubr.f32.gmra.mrb[0].mxu0 %v287
  %v391 = vpop.f32.mrb[0].mxu0
  %v392 = vadd.f32 %v55, %v391
  %v393 = vpop.f32.mrb[0].mxu0
  %394 = vmatprep.mubr.f32.mxu0 0.0
  %395 = vmatmul.mubr.f32.gmra.mrb[0].mxu0 %v289
  %v396 = vpop.f32.mrb[0].mxu0
  %v397 = vadd.f32 %v55, %v396
  %v398 = vpop.f32.mrb[0].mxu0
  %399 = vmatprep.mubr.f32.mxu0 0.0
  %400 = vmatmul.mubr.f32.gmra.mrb[0].mxu0 %v291
  %v401 = vpop.f32.mrb[0].mxu0
  %v402 = vadd.f32 %v55, %v401
  %v403 = vpop.f32.mrb[0].mxu0
  %404 = vmatprep.mubr.f32.mxu0 0.0
  %405 = vmatmul.mubr.f32.gmra.mrb[0].mxu0 %v293
  %v406 = vpop.f32.mrb[0].mxu0
  %v407 = vadd.f32 %v55, %v406
  %v408 = vpop.f32.mrb[0].mxu0
  %409 = vmatprep.mubr.f32.mxu0 0.0
  %410 = vmatmul.mubr.f32.gmra.mrb[0].mxu0 %v295
  %v411 = vpop.f32.mrb[0].mxu0
  %v412 = vadd.f32 %v55, %v411
  %v413 = vpop.f32.mrb[0].mxu0
  %414 = vmatprep.mubr.f32.mxu0 0.0
  %415 = vmatmul.mubr.f32.gmra.mrb[0].mxu0 %v297
  %v416 = vpop.f32.mrb[0].mxu0
  %v417 = vadd.f32 %v55, %v416
  %v418 = vpop.f32.mrb[0].mxu0
  %419 = vmatprep.mubr.f32.mxu0 0.0
  %420 = vmatmul.mubr.f32.gmra.mrb[0].mxu0 %v299
  %v421 = vpop.f32.mrb[0].mxu0
  %v422 = vadd.f32 %v55, %v421
  %v423 = vpop.f32.mrb[0].mxu0
  %424 = vmatprep.mubr.f32.mxu0 0.0
  %425 = vmatmul.mubr.f32.gmra.mrb[0].mxu0 %v301
  %v426 = vpop.f32.mrb[0].mxu0
  %v427 = vadd.f32 %v55, %v426
  %v428 = vpop.f32.mrb[0].mxu0
  %429 = vmatprep.mubr.f32.mxu0 0.0
  %430 = vmatmul.mubr.f32.gmra.mrb[0].mxu0 %v303
  %v431 = vpop.f32.mrb[0].mxu0
  %v432 = vadd.f32 %v55, %v431
  %v433 = vpop.f32.mrb[0].mxu0
  %434 = vmatprep.mubr.f32.mxu0 0.0
  %435 = vmatmul.mubr.f32.gmra.mrb[0].mxu0 %v305
  %v436 = vpop.f32.mrb[0].mxu0
  %v437 = vadd.f32 %v55, %v436
  %v438 = vpop.f32.mrb[0].mxu0
  %439 = vmatprep.mubr.f32.mxu0 0.0
  %440 = vmatmul.mubr.f32.gmra.mrb[0].mxu0 %v307
  %v441 = vpop.f32.mrb[0].mxu0
  %v442 = vadd.f32 %v55, %v441
  %v443 = vpop.f32.mrb[0].mxu0
  %444 = vmatprep.mubr.f32.mxu0 0.0
  %445 = vmatmul.mubr.f32.gmra.mrb[0].mxu0 %v309
  %v446 = vpop.f32.mrb[0].mxu0
  %v447 = vadd.f32 %v55, %v446
  %v448 = vpop.f32.mrb[0].mxu0
  %449 = vmatprep.mubr.f32.mxu0 0.0
  %450 = vmatmul.mubr.f32.gmra.mrb[0].mxu0 %v311
  %v451 = vpop.f32.mrb[0].mxu0
  %v452 = vadd.f32 %v55, %v451
  %v453 = vpop.f32.mrb[0].mxu0
  %454 = vmatprep.mubr.f32.mxu0 0.0
  %455 = vmatmul.mubr.f32.gmra.mrb[0].mxu0 %v313
  %v456 = vpop.f32.mrb[0].mxu0
  %v457 = vadd.f32 %v55, %v456
  %v458 = vpop.f32.mrb[0].mxu0
  %459 = vdwg.mxu0
  %460 = vrot.lane.b32.xlu0 %v32, 96
  %v461 = vpop.permute.xlu0 %460
  %462 = vrot.lane.b32.xlu0 %v33, 96
  %v463 = vpop.permute.xlu0 %462
  %464 = vrot.lane.b32.xlu0 %v34, 96
  %v465 = vpop.permute.xlu0 %464
  %466 = vrot.lane.b32.xlu0 %v35, 96
  %v467 = vpop.permute.xlu0 %466
  %468 = vrot.lane.b32.xlu0 %v36, 96
  %v469 = vpop.permute.xlu0 %468
  %470 = vrot.lane.b32.xlu0 %v37, 96
  %v471 = vpop.permute.xlu0 %470
  %472 = vrot.lane.b32.xlu0 %v38, 96
  %v473 = vpop.permute.xlu0 %472
  %474 = vrot.lane.b32.xlu0 %v39, 96
  %v475 = vpop.permute.xlu0 %474
  %476 = vrot.lane.b32.xlu0 %v40, 96
  %v477 = vpop.permute.xlu0 %476
  %478 = vrot.lane.b32.xlu0 %v41, 96
  %v479 = vpop.permute.xlu0 %478
  %480 = vrot.lane.b32.xlu0 %v42, 96
  %v481 = vpop.permute.xlu0 %480
  %482 = vrot.lane.b32.xlu0 %v43, 96
  %v483 = vpop.permute.xlu0 %482
  %484 = vrot.lane.b32.xlu0 %v44, 96
  %v485 = vpop.permute.xlu0 %484
  %486 = vrot.lane.b32.xlu0 %v45, 96
  %v487 = vpop.permute.xlu0 %486
  %488 = vrot.lane.b32.xlu0 %v46, 96
  %v489 = vpop.permute.xlu0 %488
  %490 = vrot.lane.b32.xlu0 %v47, 96
  %v491 = vpop.permute.xlu0 %490
  %v492 = vsel %vm57, %v461, 0
  %v494 = vsel %vm57, %v463, 0
  %v496 = vsel %vm57, %v465, 0
  %v498 = vsel %vm57, %v467, 0
  %v500 = vsel %vm57, %v469, 0
  %v502 = vsel %vm57, %v471, 0
  %v504 = vsel %vm57, %v473, 0
  %v506 = vsel %vm57, %v475, 0
  %v508 = vsel %vm57, %v477, 0
  %v510 = vsel %vm57, %v479, 0
  %v512 = vsel %vm57, %v481, 0
  %v514 = vsel %vm57, %v483, 0
  %v516 = vsel %vm57, %v485, 0
  %v518 = vsel %vm57, %v487, 0
  %v520 = vsel %vm57, %v489, 0
  %v522 = vsel %vm57, %v491, 0
  %524 = vmatprep.subr.mxu0 0.0
  %525 = vmatpush1.msra.mxu0 %v48
  %526 = vmatprep.subr.mxu0 0.0
  %527 = vmatpush1.msra.mxu0 %v49
  %528 = vmatprep.subr.mxu0 0.0
  %529 = vmatpush1.msra.mxu0 0.0
  %530 = vmatprep.subr.mxu0 0.0
  %531 = vmatpush1.msra.mxu0 0.0
  %532 = vmatprep.subr.mxu0 0.0
  %533 = vmatpush1.msra.mxu0 0.0
  %534 = vmatprep.subr.mxu0 0.0
  %535 = vmatpush1.msra.mxu0 0.0
  %536 = vmatprep.subr.mxu0 0.0
  %537 = vmatpush1.msra.mxu0 0.0
  %538 = vmatprep.subr.mxu0 0.0
  %539 = vmatpush1.msra.mxu0 0.0
  %540 = vmatprep.subr.mxu0 0.0
  %541 = vmatpush1.msra.mxu0 0.0
  %542 = vmatprep.subr.mxu0 0.0
  %543 = vmatpush1.msra.mxu0 0.0
  %544 = vmatprep.subr.mxu0 0.0
  %545 = vmatpush1.msra.mxu0 0.0
  %546 = vmatprep.subr.mxu0 0.0
  %547 = vmatpush1.msra.mxu0 0.0
  %548 = vmatprep.subr.mxu0 0.0
  %549 = vmatpush1.msra.mxu0 0.0
  %550 = vmatprep.subr.mxu0 0.0
  %551 = vmatpush1.msra.mxu0 0.0
  %552 = vmatprep.subr.mxu0 0.0
  %553 = vmatpush1.msra.mxu0 0.0
  %554 = vmatprep.subr.mxu0 0.0
  %555 = vmatpush1.msra.mxu0 0.0
  %556 = vmatprep.subr.mxu0 0.0
  %557 = vmatpush1.msra.mxu0 0.0
  %558 = vmatprep.subr.mxu0 0.0
  %559 = vmatpush1.msra.mxu0 0.0
  %560 = vmatprep.subr.mxu0 0.0
  %561 = vmatpush1.msra.mxu0 0.0
  %562 = vmatprep.subr.mxu0 0.0
  %563 = vmatpush1.msra.mxu0 0.0
  %564 = vmatprep.subr.mxu0 0.0
  %565 = vmatpush1.msra.mxu0 0.0
  %566 = vmatprep.subr.mxu0 0.0
  %567 = vmatpush1.msra.mxu0 0.0
  %568 = vmatprep.subr.mxu0 0.0
  %569 = vmatpush1.msra.mxu0 0.0
  %570 = vmatprep.subr.mxu0 0.0
  %571 = vmatpush1.msra.mxu0 0.0
  %572 = vmatprep.subr.mxu0 0.0
  %573 = vmatpush1.msra.mxu0 0.0
  %574 = vmatprep.subr.mxu0 0.0
  %575 = vmatpush1.msra.mxu0 0.0
  %576 = vmatprep.subr.mxu0 0.0
  %577 = vmatpush1.msra.mxu0 0.0
  %578 = vmatprep.subr.mxu0 0.0
  %579 = vmatpush1.msra.mxu0 0.0
  %580 = vmatprep.subr.mxu0 0.0
  %581 = vmatpush1.msra.mxu0 0.0
  %582 = vmatprep.subr.mxu0 0.0
  %583 = vmatpush1.msra.mxu0 0.0
  %584 = vmatprep.subr.mxu0 0.0
  %585 = vmatpush1.msra.mxu0 0.0
  %586 = vmatprep.subr.mxu0 0.0
  %587 = vmatpush1.msra.mxu0 0.0
  %588 = vmatprep.mubr.f32.mxu0 0.0
  %589 = vmatmul.mubr.f32.gmra.mrb[0].mxu0 %v492
  %v590 = vpop.f32.mrb[0].mxu0
  %v591 = vadd.f32 %v55, %v590
  %v592 = vpop.f32.mrb[0].mxu0
  %593 = vmatprep.mubr.f32.mxu0 0.0
  %594 = vmatmul.mubr.f32.gmra.mrb[0].mxu0 %v494
  %v595 = vpop.f32.mrb[0].mxu0
  %v596 = vadd.f32 %v55, %v595
  %v597 = vpop.f32.mrb[0].mxu0
  %598 = vmatprep.mubr.f32.mxu0 0.0
  %599 = vmatmul.mubr.f32.gmra.mrb[0].mxu0 %v496
  %v600 = vpop.f32.mrb[0].mxu0
  %v601 = vadd.f32 %v55, %v600
  %v602 = vpop.f32.mrb[0].mxu0
  %603 = vmatprep.mubr.f32.mxu0 0.0
  %604 = vmatmul.mubr.f32.gmra.mrb[0].mxu0 %v498
  %v605 = vpop.f32.mrb[0].mxu0
  %v606 = vadd.f32 %v55, %v605
  %v607 = vpop.f32.mrb[0].mxu0
  %608 = vmatprep.mubr.f32.mxu0 0.0
  %609 = vmatmul.mubr.f32.gmra.mrb[0].mxu0 %v500
  %v610 = vpop.f32.mrb[0].mxu0
  %v611 = vadd.f32 %v55, %v610
  %v612 = vpop.f32.mrb[0].mxu0
  %613 = vmatprep.mubr.f32.mxu0 0.0
  %614 = vmatmul.mubr.f32.gmra.mrb[0].mxu0 %v502
  %v615 = vpop.f32.mrb[0].mxu0
  %v616 = vadd.f32 %v55, %v615
  %v617 = vpop.f32.mrb[0].mxu0
  %618 = vmatprep.mubr.f32.mxu0 0.0
  %619 = vmatmul.mubr.f32.gmra.mrb[0].mxu0 %v504
  %v620 = vpop.f32.mrb[0].mxu0
  %v621 = vadd.f32 %v55, %v620
  %v622 = vpop.f32.mrb[0].mxu0
  %623 = vmatprep.mubr.f32.mxu0 0.0
  %624 = vmatmul.mubr.f32.gmra.mrb[0].mxu0 %v506
  %v625 = vpop.f32.mrb[0].mxu0
  %v626 = vadd.f32 %v55, %v625
  %v627 = vpop.f32.mrb[0].mxu0
  %628 = vmatprep.mubr.f32.mxu0 0.0
  %629 = vmatmul.mubr.f32.gmra.mrb[0].mxu0 %v508
  %v630 = vpop.f32.mrb[0].mxu0
  %v631 = vadd.f32 %v55, %v630
  %v632 = vpop.f32.mrb[0].mxu0
  %633 = vmatprep.mubr.f32.mxu0 0.0
  %634 = vmatmul.mubr.f32.gmra.mrb[0].mxu0 %v510
  %v635 = vpop.f32.mrb[0].mxu0
  %v636 = vadd.f32 %v55, %v635
  %v637 = vpop.f32.mrb[0].mxu0
  %638 = vmatprep.mubr.f32.mxu0 0.0
  %639 = vmatmul.mubr.f32.gmra.mrb[0].mxu0 %v512
  %v640 = vpop.f32.mrb[0].mxu0
  %v641 = vadd.f32 %v55, %v640
  %v642 = vpop.f32.mrb[0].mxu0
  %643 = vmatprep.mubr.f32.mxu0 0.0
  %644 = vmatmul.mubr.f32.gmra.mrb[0].mxu0 %v514
  %v645 = vpop.f32.mrb[0].mxu0
  %v646 = vadd.f32 %v55, %v645
  %v647 = vpop.f32.mrb[0].mxu0
  %648 = vmatprep.mubr.f32.mxu0 0.0
  %649 = vmatmul.mubr.f32.gmra.mrb[0].mxu0 %v516
  %v650 = vpop.f32.mrb[0].mxu0
  %v651 = vadd.f32 %v55, %v650
  %v652 = vpop.f32.mrb[0].mxu0
  %653 = vmatprep.mubr.f32.mxu0 0.0
  %654 = vmatmul.mubr.f32.gmra.mrb[0].mxu0 %v518
  %v655 = vpop.f32.mrb[0].mxu0
  %v656 = vadd.f32 %v55, %v655
  %v657 = vpop.f32.mrb[0].mxu0
  %658 = vmatprep.mubr.f32.mxu0 0.0
  %659 = vmatmul.mubr.f32.gmra.mrb[0].mxu0 %v520
  %v660 = vpop.f32.mrb[0].mxu0
  %v661 = vadd.f32 %v55, %v660
  %v662 = vpop.f32.mrb[0].mxu0
  %663 = vmatprep.mubr.f32.mxu0 0.0
  %664 = vmatmul.mubr.f32.gmra.mrb[0].mxu0 %v522
  %v665 = vpop.f32.mrb[0].mxu0
  %v666 = vadd.f32 %v55, %v665
  %v667 = vpop.f32.mrb[0].mxu0
  %668 = vdwg.mxu0
  %669 = vrot.lane.b32.xlu0 %v32, 80
  %v670 = vpop.permute.xlu0 %669
  %671 = vrot.lane.b32.xlu0 %v33, 80
  %v672 = vpop.permute.xlu0 %671
  %673 = vrot.lane.b32.xlu0 %v34, 80
  %v674 = vpop.permute.xlu0 %673
  %675 = vrot.lane.b32.xlu0 %v35, 80
  %v676 = vpop.permute.xlu0 %675
  %677 = vrot.lane.b32.xlu0 %v36, 80
  %v678 = vpop.permute.xlu0 %677
  %679 = vrot.lane.b32.xlu0 %v37, 80
  %v680 = vpop.permute.xlu0 %679
  %681 = vrot.lane.b32.xlu0 %v38, 80
  %v682 = vpop.permute.xlu0 %681
  %683 = vrot.lane.b32.xlu0 %v39, 80
  %v684 = vpop.permute.xlu0 %683
  %685 = vrot.lane.b32.xlu0 %v40, 80
  %v686 = vpop.permute.xlu0 %685
  %687 = vrot.lane.b32.xlu0 %v41, 80
  %v688 = vpop.permute.xlu0 %687
  %689 = vrot.lane.b32.xlu0 %v42, 80
  %v690 = vpop.permute.xlu0 %689
  %691 = vrot.lane.b32.xlu0 %v43, 80
  %v692 = vpop.permute.xlu0 %691
  %693 = vrot.lane.b32.xlu0 %v44, 80
  %v694 = vpop.permute.xlu0 %693
  %695 = vrot.lane.b32.xlu0 %v45, 80
  %v696 = vpop.permute.xlu0 %695
  %697 = vrot.lane.b32.xlu0 %v46, 80
  %v698 = vpop.permute.xlu0 %697
  %699 = vrot.lane.b32.xlu0 %v47, 80
  %v700 = vpop.permute.xlu0 %699
  %v701 = vsel %vm57, %v670, 0
  %v703 = vsel %vm57, %v672, 0
  %v705 = vsel %vm57, %v674, 0
  %v707 = vsel %vm57, %v676, 0
  %v709 = vsel %vm57, %v678, 0
  %v711 = vsel %vm57, %v680, 0
  %v713 = vsel %vm57, %v682, 0
  %v715 = vsel %vm57, %v684, 0
  %v717 = vsel %vm57, %v686, 0
  %v719 = vsel %vm57, %v688, 0
  %v721 = vsel %vm57, %v690, 0
  %v723 = vsel %vm57, %v692, 0
  %v725 = vsel %vm57, %v694, 0
  %v727 = vsel %vm57, %v696, 0
  %v729 = vsel %vm57, %v698, 0
  %v731 = vsel %vm57, %v700, 0
  %733 = vmatprep.subr.mxu0 0.0
  %734 = vmatpush1.msra.mxu0 %v48
  %735 = vmatprep.subr.mxu0 0.0
  %736 = vmatpush1.msra.mxu0 %v49
  %737 = vmatprep.subr.mxu0 0.0
  %738 = vmatpush1.msra.mxu0 0.0
  %739 = vmatprep.subr.mxu0 0.0
  %740 = vmatpush1.msra.mxu0 0.0
  %741 = vmatprep.subr.mxu0 0.0
  %742 = vmatpush1.msra.mxu0 0.0
  %743 = vmatprep.subr.mxu0 0.0
  %744 = vmatpush1.msra.mxu0 0.0
  %745 = vmatprep.subr.mxu0 0.0
  %746 = vmatpush1.msra.mxu0 0.0
  %747 = vmatprep.subr.mxu0 0.0
  %748 = vmatpush1.msra.mxu0 0.0
  %749 = vmatprep.subr.mxu0 0.0
  %750 = vmatpush1.msra.mxu0 0.0
  %751 = vmatprep.subr.mxu0 0.0
  %752 = vmatpush1.msra.mxu0 0.0
  %753 = vmatprep.subr.mxu0 0.0
  %754 = vmatpush1.msra.mxu0 0.0
  %755 = vmatprep.subr.mxu0 0.0
  %756 = vmatpush1.msra.mxu0 0.0
  %757 = vmatprep.subr.mxu0 0.0
  %758 = vmatpush1.msra.mxu0 0.0
  %759 = vmatprep.subr.mxu0 0.0
  %760 = vmatpush1.msra.mxu0 0.0
  %761 = vmatprep.subr.mxu0 0.0
  %762 = vmatpush1.msra.mxu0 0.0
  %763 = vmatprep.subr.mxu0 0.0
  %764 = vmatpush1.msra.mxu0 0.0
  %765 = vmatprep.subr.mxu0 0.0
  %766 = vmatpush1.msra.mxu0 0.0
  %767 = vmatprep.subr.mxu0 0.0
  %768 = vmatpush1.msra.mxu0 0.0
  %769 = vmatprep.subr.mxu0 0.0
  %770 = vmatpush1.msra.mxu0 0.0
  %771 = vmatprep.subr.mxu0 0.0
  %772 = vmatpush1.msra.mxu0 0.0
  %773 = vmatprep.subr.mxu0 0.0
  %774 = vmatpush1.msra.mxu0 0.0
  %775 = vmatprep.subr.mxu0 0.0
  %776 = vmatpush1.msra.mxu0 0.0
  %777 = vmatprep.subr.mxu0 0.0
  %778 = vmatpush1.msra.mxu0 0.0
  %779 = vmatprep.subr.mxu0 0.0
  %780 = vmatpush1.msra.mxu0 0.0
  %781 = vmatprep.subr.mxu0 0.0
  %782 = vmatpush1.msra.mxu0 0.0
  %783 = vmatprep.subr.mxu0 0.0
  %784 = vmatpush1.msra.mxu0 0.0
  %785 = vmatprep.subr.mxu0 0.0
  %786 = vmatpush1.msra.mxu0 0.0
  %787 = vmatprep.subr.mxu0 0.0
  %788 = vmatpush1.msra.mxu0 0.0
  %789 = vmatprep.subr.mxu0 0.0
  %790 = vmatpush1.msra.mxu0 0.0
  %791 = vmatprep.subr.mxu0 0.0
  %792 = vmatpush1.msra.mxu0 0.0
  %793 = vmatprep.subr.mxu0 0.0
  %794 = vmatpush1.msra.mxu0 0.0
  %795 = vmatprep.subr.mxu0 0.0
  %796 = vmatpush1.msra.mxu0 0.0
  %797 = vmatprep.mubr.f32.mxu0 0.0
  %798 = vmatmul.mubr.f32.gmra.mrb[0].mxu0 %v701
  %v799 = vpop.f32.mrb[0].mxu0
  %v800 = vadd.f32 %v55, %v799
  %v801 = vpop.f32.mrb[0].mxu0
  %802 = vmatprep.mubr.f32.mxu0 0.0
  %803 = vmatmul.mubr.f32.gmra.mrb[0].mxu0 %v703
  %v804 = vpop.f32.mrb[0].mxu0
  %v805 = vadd.f32 %v55, %v804
  %v806 = vpop.f32.mrb[0].mxu0
  %807 = vmatprep.mubr.f32.mxu0 0.0
  %808 = vmatmul.mubr.f32.gmra.mrb[0].mxu0 %v705
  %v809 = vpop.f32.mrb[0].mxu0
  %v810 = vadd.f32 %v55, %v809
  %v811 = vpop.f32.mrb[0].mxu0
  %812 = vmatprep.mubr.f32.mxu0 0.0
  %813 = vmatmul.mubr.f32.gmra.mrb[0].mxu0 %v707
  %v814 = vpop.f32.mrb[0].mxu0
  %v815 = vadd.f32 %v55, %v814
  %v816 = vpop.f32.mrb[0].mxu0
  %817 = vmatprep.mubr.f32.mxu0 0.0
  %818 = vmatmul.mubr.f32.gmra.mrb[0].mxu0 %v709
  %v819 = vpop.f32.mrb[0].mxu0
  %v820 = vadd.f32 %v55, %v819
  %v821 = vpop.f32.mrb[0].mxu0
  %822 = vmatprep.mubr.f32.mxu0 0.0
  %823 = vmatmul.mubr.f32.gmra.mrb[0].mxu0 %v711
  %v824 = vpop.f32.mrb[0].mxu0
  %v825 = vadd.f32 %v55, %v824
  %v826 = vpop.f32.mrb[0].mxu0
  %827 = vmatprep.mubr.f32.mxu0 0.0
  %828 = vmatmul.mubr.f32.gmra.mrb[0].mxu0 %v713
  %v829 = vpop.f32.mrb[0].mxu0
  %v830 = vadd.f32 %v55, %v829
  %v831 = vpop.f32.mrb[0].mxu0
  %832 = vmatprep.mubr.f32.mxu0 0.0
  %833 = vmatmul.mubr.f32.gmra.mrb[0].mxu0 %v715
  %v834 = vpop.f32.mrb[0].mxu0
  %v835 = vadd.f32 %v55, %v834
  %v836 = vpop.f32.mrb[0].mxu0
  %837 = vmatprep.mubr.f32.mxu0 0.0
  %838 = vmatmul.mubr.f32.gmra.mrb[0].mxu0 %v717
  %v839 = vpop.f32.mrb[0].mxu0
  %v840 = vadd.f32 %v55, %v839
  %v841 = vpop.f32.mrb[0].mxu0
  %842 = vmatprep.mubr.f32.mxu0 0.0
  %843 = vmatmul.mubr.f32.gmra.mrb[0].mxu0 %v719
  %v844 = vpop.f32.mrb[0].mxu0
  %v845 = vadd.f32 %v55, %v844
  %v846 = vpop.f32.mrb[0].mxu0
  %847 = vmatprep.mubr.f32.mxu0 0.0
  %848 = vmatmul.mubr.f32.gmra.mrb[0].mxu0 %v721
  %v849 = vpop.f32.mrb[0].mxu0
  %v850 = vadd.f32 %v55, %v849
  %v851 = vpop.f32.mrb[0].mxu0
  %852 = vmatprep.mubr.f32.mxu0 0.0
  %853 = vmatmul.mubr.f32.gmra.mrb[0].mxu0 %v723
  %v854 = vpop.f32.mrb[0].mxu0
  %v855 = vadd.f32 %v55, %v854
  %v856 = vpop.f32.mrb[0].mxu0
  %857 = vmatprep.mubr.f32.mxu0 0.0
  %858 = vmatmul.mubr.f32.gmra.mrb[0].mxu0 %v725
  %v859 = vpop.f32.mrb[0].mxu0
  %v860 = vadd.f32 %v55, %v859
  %v861 = vpop.f32.mrb[0].mxu0
  %862 = vmatprep.mubr.f32.mxu0 0.0
  %863 = vmatmul.mubr.f32.gmra.mrb[0].mxu0 %v727
  %v864 = vpop.f32.mrb[0].mxu0
  %v865 = vadd.f32 %v55, %v864
  %v866 = vpop.f32.mrb[0].mxu0
  %867 = vmatprep.mubr.f32.mxu0 0.0
  %868 = vmatmul.mubr.f32.gmra.mrb[0].mxu0 %v729
  %v869 = vpop.f32.mrb[0].mxu0
  %v870 = vadd.f32 %v55, %v869
  %v871 = vpop.f32.mrb[0].mxu0
  %872 = vmatprep.mubr.f32.mxu0 0.0
  %873 = vmatmul.mubr.f32.gmra.mrb[0].mxu0 %v731
  %v874 = vpop.f32.mrb[0].mxu0
  %v875 = vadd.f32 %v55, %v874
  %v876 = vpop.f32.mrb[0].mxu0
  %877 = vdwg.mxu0
  %894 = vrot.lane.b32.xlu0 %v382, 4
  %v895 = vpop.permute.xlu0 %894
  %896 = vrot.lane.b32.xlu0 %v387, 4
  %v897 = vpop.permute.xlu0 %896
  %898 = vrot.lane.b32.xlu0 %v392, 4
  %v899 = vpop.permute.xlu0 %898
  %900 = vrot.lane.b32.xlu0 %v397, 4
  %v901 = vpop.permute.xlu0 %900
  %902 = vrot.lane.b32.xlu0 %v402, 4
  %v903 = vpop.permute.xlu0 %902
  %904 = vrot.lane.b32.xlu0 %v407, 4
  %v905 = vpop.permute.xlu0 %904
  %906 = vrot.lane.b32.xlu0 %v412, 4
  %v907 = vpop.permute.xlu0 %906
  %908 = vrot.lane.b32.xlu0 %v417, 4
  %v909 = vpop.permute.xlu0 %908
  %910 = vrot.lane.b32.xlu0 %v422, 4
  %v911 = vpop.permute.xlu0 %910
  %912 = vrot.lane.b32.xlu0 %v427, 4
  %v913 = vpop.permute.xlu0 %912
  %914 = vrot.lane.b32.xlu0 %v432, 4
  %v915 = vpop.permute.xlu0 %914
  %916 = vrot.lane.b32.xlu0 %v437, 4
  %v917 = vpop.permute.xlu0 %916
  %918 = vrot.lane.b32.xlu0 %v442, 4
  %v919 = vpop.permute.xlu0 %918
  %920 = vrot.lane.b32.xlu0 %v447, 4
  %v921 = vpop.permute.xlu0 %920
  %922 = vrot.lane.b32.xlu0 %v452, 4
  %v923 = vpop.permute.xlu0 %922
  %924 = vrot.lane.b32.xlu0 %v457, 4
  %v925 = vpop.permute.xlu0 %924
  %958 = vrot.lane.b32.xlu0 %v591, 8
  %v959 = vpop.permute.xlu0 %958
  %960 = vrot.lane.b32.xlu0 %v596, 8
  %v961 = vpop.permute.xlu0 %960
  %962 = vrot.lane.b32.xlu0 %v601, 8
  %v963 = vpop.permute.xlu0 %962
  %964 = vrot.lane.b32.xlu0 %v606, 8
  %v965 = vpop.permute.xlu0 %964
  %966 = vrot.lane.b32.xlu0 %v611, 8
  %v967 = vpop.permute.xlu0 %966
  %968 = vrot.lane.b32.xlu0 %v616, 8
  %v969 = vpop.permute.xlu0 %968
  %970 = vrot.lane.b32.xlu0 %v621, 8
  %v971 = vpop.permute.xlu0 %970
  %972 = vrot.lane.b32.xlu0 %v626, 8
  %v973 = vpop.permute.xlu0 %972
  %974 = vrot.lane.b32.xlu0 %v631, 8
  %v975 = vpop.permute.xlu0 %974
  %976 = vrot.lane.b32.xlu0 %v636, 8
  %v977 = vpop.permute.xlu0 %976
  %978 = vrot.lane.b32.xlu0 %v641, 8
  %v979 = vpop.permute.xlu0 %978
  %980 = vrot.lane.b32.xlu0 %v646, 8
  %v981 = vpop.permute.xlu0 %980
  %982 = vrot.lane.b32.xlu0 %v651, 8
  %v983 = vpop.permute.xlu0 %982
  %984 = vrot.lane.b32.xlu0 %v656, 8
  %v985 = vpop.permute.xlu0 %984
  %986 = vrot.lane.b32.xlu0 %v661, 8
  %v987 = vpop.permute.xlu0 %986
  %988 = vrot.lane.b32.xlu0 %v666, 8
  %v989 = vpop.permute.xlu0 %988
  %1022 = vrot.lane.b32.xlu0 %v800, 12
  %v1023 = vpop.permute.xlu0 %1022
  %1024 = vrot.lane.b32.xlu0 %v805, 12
  %v1025 = vpop.permute.xlu0 %1024
  %1026 = vrot.lane.b32.xlu0 %v810, 12
  %v1027 = vpop.permute.xlu0 %1026
  %1028 = vrot.lane.b32.xlu0 %v815, 12
  %v1029 = vpop.permute.xlu0 %1028
  %1030 = vrot.lane.b32.xlu0 %v820, 12
  %v1031 = vpop.permute.xlu0 %1030
  %1032 = vrot.lane.b32.xlu0 %v825, 12
  %v1033 = vpop.permute.xlu0 %1032
  %1034 = vrot.lane.b32.xlu0 %v830, 12
  %v1035 = vpop.permute.xlu0 %1034
  %1036 = vrot.lane.b32.xlu0 %v835, 12
  %v1037 = vpop.permute.xlu0 %1036
  %1038 = vrot.lane.b32.xlu0 %v840, 12
  %v1039 = vpop.permute.xlu0 %1038
  %1040 = vrot.lane.b32.xlu0 %v845, 12
  %v1041 = vpop.permute.xlu0 %1040
  %1042 = vrot.lane.b32.xlu0 %v850, 12
  %v1043 = vpop.permute.xlu0 %1042
  %1044 = vrot.lane.b32.xlu0 %v855, 12
  %v1045 = vpop.permute.xlu0 %1044
  %1046 = vrot.lane.b32.xlu0 %v860, 12
  %v1047 = vpop.permute.xlu0 %1046
  %1048 = vrot.lane.b32.xlu0 %v865, 12
  %v1049 = vpop.permute.xlu0 %1048
  %1050 = vrot.lane.b32.xlu0 %v870, 12
  %v1051 = vpop.permute.xlu0 %1050
  %1052 = vrot.lane.b32.xlu0 %v875, 12
  %v1053 = vpop.permute.xlu0 %1052
  %vm1070 = vcmask 31744
  %v1071 = vsel %vm1070, %v173, %v895
  %v1072 = vsel %vm1070, %v178, %v897
  %v1073 = vsel %vm1070, %v183, %v899
  %v1074 = vsel %vm1070, %v188, %v901
  %v1075 = vsel %vm1070, %v193, %v903
  %v1076 = vsel %vm1070, %v198, %v905
  %v1077 = vsel %vm1070, %v203, %v907
  %v1078 = vsel %vm1070, %v208, %v909
  %v1079 = vsel %vm1070, %v213, %v911
  %v1080 = vsel %vm1070, %v218, %v913
  %v1081 = vsel %vm1070, %v223, %v915
  %v1082 = vsel %vm1070, %v228, %v917
  %v1083 = vsel %vm1070, %v233, %v919
  %v1084 = vsel %vm1070, %v238, %v921
  %v1085 = vsel %vm1070, %v243, %v923
  %v1086 = vsel %vm1070, %v248, %v925
  %vm1087 = vcmask 64512
  %v1088 = vsel %vm1087, %v1071, %v959
  %v1089 = vsel %vm1087, %v1072, %v961
  %v1090 = vsel %vm1087, %v1073, %v963
  %v1091 = vsel %vm1087, %v1074, %v965
  %v1092 = vsel %vm1087, %v1075, %v967
  %v1093 = vsel %vm1087, %v1076, %v969
  %v1094 = vsel %vm1087, %v1077, %v971
  %v1095 = vsel %vm1087, %v1078, %v973
  %v1096 = vsel %vm1087, %v1079, %v975
  %v1097 = vsel %vm1087, %v1080, %v977
  %v1098 = vsel %vm1087, %v1081, %v979
  %v1099 = vsel %vm1087, %v1082, %v981
  %v1100 = vsel %vm1087, %v1083, %v983
  %v1101 = vsel %vm1087, %v1084, %v985
  %v1102 = vsel %vm1087, %v1085, %v987
  %v1103 = vsel %vm1087, %v1086, %v989
  %vm1104 = vcmask 97280
  %v1105 = vsel %vm1104, %v1088, %v1023
  %v1106 = vsel %vm1104, %v1089, %v1025
  %v1107 = vsel %vm1104, %v1090, %v1027
  %v1108 = vsel %vm1104, %v1091, %v1029
  %v1109 = vsel %vm1104, %v1092, %v1031
  %v1110 = vsel %vm1104, %v1093, %v1033
  %v1111 = vsel %vm1104, %v1094, %v1035
  %v1112 = vsel %vm1104, %v1095, %v1037
  %v1113 = vsel %vm1104, %v1096, %v1039
  %v1114 = vsel %vm1104, %v1097, %v1041
  %v1115 = vsel %vm1104, %v1098, %v1043
  %v1116 = vsel %vm1104, %v1099, %v1045
  %v1117 = vsel %vm1104, %v1100, %v1047
  %v1118 = vsel %vm1104, %v1101, %v1049
  %v1119 = vsel %vm1104, %v1102, %v1051
  %v1120 = vsel %vm1104, %v1103, %v1053
  %v1121 = vld [vmem:[%s3] sm:$0xff]
  %v1122 = vld [vmem:[%s3 + $0x8] sm:$0xff]
  %v1123 = vld [vmem:[%s4] sm:$0x1]
  %v1125 = vlaneseq
  %v1126 = vshrl.u32 %v1125, 7
  %v1127 = vsub.s32 0, %v1126
  %v1128 = vrot.slane %v1123, %v1127
  %v1131 = vsel %vm57, %v1105, 0
  %v1134 = vsel %vm57, %v1106, 0
  %v1137 = vsel %vm57, %v1107, 0
  %v1140 = vsel %vm57, %v1108, 0
  %v1143 = vsel %vm57, %v1109, 0
  %v1146 = vsel %vm57, %v1110, 0
  %v1149 = vsel %vm57, %v1111, 0
  %v1152 = vsel %vm57, %v1112, 0
  %v1155 = vsel %vm57, %v1113, 0
  %v1158 = vsel %vm57, %v1114, 0
  %v1161 = vsel %vm57, %v1115, 0
  %v1164 = vsel %vm57, %v1116, 0
  %v1167 = vsel %vm57, %v1117, 0
  %v1170 = vsel %vm57, %v1118, 0
  %v1173 = vsel %vm57, %v1119, 0
  %v1176 = vsel %vm57, %v1120, 0
  %1178 = vmatprep.subr.mxu0 0.0
  %1179 = vmatpush1.msra.mxu0 %v1121
  %1180 = vmatprep.subr.mxu0 0.0
  %1181 = vmatpush1.msra.mxu0 %v1122
  %1182 = vmatprep.subr.mxu0 0.0
  %1183 = vmatpush1.msra.mxu0 0.0
  %1184 = vmatprep.subr.mxu0 0.0
  %1185 = vmatpush1.msra.mxu0 0.0
  %1186 = vmatprep.subr.mxu0 0.0
  %1187 = vmatpush1.msra.mxu0 0.0
  %1188 = vmatprep.subr.mxu0 0.0
  %1189 = vmatpush1.msra.mxu0 0.0
  %1190 = vmatprep.subr.mxu0 0.0
  %1191 = vmatpush1.msra.mxu0 0.0
  %1192 = vmatprep.subr.mxu0 0.0
  %1193 = vmatpush1.msra.mxu0 0.0
  %1194 = vmatprep.subr.mxu0 0.0
  %1195 = vmatpush1.msra.mxu0 0.0
  %1196 = vmatprep.subr.mxu0 0.0
  %1197 = vmatpush1.msra.mxu0 0.0
  %1198 = vmatprep.subr.mxu0 0.0
  %1199 = vmatpush1.msra.mxu0 0.0
  %1200 = vmatprep.subr.mxu0 0.0
  %1201 = vmatpush1.msra.mxu0 0.0
  %1202 = vmatprep.subr.mxu0 0.0
  %1203 = vmatpush1.msra.mxu0 0.0
  %1204 = vmatprep.subr.mxu0 0.0
  %1205 = vmatpush1.msra.mxu0 0.0
  %1206 = vmatprep.subr.mxu0 0.0
  %1207 = vmatpush1.msra.mxu0 0.0
  %1208 = vmatprep.subr.mxu0 0.0
  %1209 = vmatpush1.msra.mxu0 0.0
  %1210 = vmatprep.subr.mxu0 0.0
  %1211 = vmatpush1.msra.mxu0 0.0
  %1212 = vmatprep.subr.mxu0 0.0
  %1213 = vmatpush1.msra.mxu0 0.0
  %1214 = vmatprep.subr.mxu0 0.0
  %1215 = vmatpush1.msra.mxu0 0.0
  %1216 = vmatprep.subr.mxu0 0.0
  %1217 = vmatpush1.msra.mxu0 0.0
  %1218 = vmatprep.subr.mxu0 0.0
  %1219 = vmatpush1.msra.mxu0 0.0
  %1220 = vmatprep.subr.mxu0 0.0
  %1221 = vmatpush1.msra.mxu0 0.0
  %1222 = vmatprep.subr.mxu0 0.0
  %1223 = vmatpush1.msra.mxu0 0.0
  %1224 = vmatprep.subr.mxu0 0.0
  %1225 = vmatpush1.msra.mxu0 0.0
  %1226 = vmatprep.subr.mxu0 0.0
  %1227 = vmatpush1.msra.mxu0 0.0
  %1228 = vmatprep.subr.mxu0 0.0
  %1229 = vmatpush1.msra.mxu0 0.0
  %1230 = vmatprep.subr.mxu0 0.0
  %1231 = vmatpush1.msra.mxu0 0.0
  %1232 = vmatprep.subr.mxu0 0.0
  %1233 = vmatpush1.msra.mxu0 0.0
  %1234 = vmatprep.subr.mxu0 0.0
  %1235 = vmatpush1.msra.mxu0 0.0
  %1236 = vmatprep.subr.mxu0 0.0
  %1237 = vmatpush1.msra.mxu0 0.0
  %1238 = vmatprep.subr.mxu0 0.0
  %1239 = vmatpush1.msra.mxu0 0.0
  %1240 = vmatprep.subr.mxu0 0.0
  %1241 = vmatpush1.msra.mxu0 0.0
  %1242 = vmatprep.mubr.f32.mxu0 0.0
  %1243 = vmatmul.mubr.f32.gmra.mrb[0].mxu0 %v1131
  %v1244 = vpop.f32.mrb[0].mxu0
  %v1245 = vadd.f32 %v1128, %v1244
  %v1246 = vpop.f32.mrb[0].mxu0
  %1247 = vmatprep.mubr.f32.mxu0 0.0
  %1248 = vmatmul.mubr.f32.gmra.mrb[0].mxu0 %v1134
  %v1249 = vpop.f32.mrb[0].mxu0
  %v1250 = vadd.f32 %v1128, %v1249
  %v1251 = vpop.f32.mrb[0].mxu0
  %1252 = vmatprep.mubr.f32.mxu0 0.0
  %1253 = vmatmul.mubr.f32.gmra.mrb[0].mxu0 %v1137
  %v1254 = vpop.f32.mrb[0].mxu0
  %v1255 = vadd.f32 %v1128, %v1254
  %v1256 = vpop.f32.mrb[0].mxu0
  %1257 = vmatprep.mubr.f32.mxu0 0.0
  %1258 = vmatmul.mubr.f32.gmra.mrb[0].mxu0 %v1140
  %v1259 = vpop.f32.mrb[0].mxu0
  %v1260 = vadd.f32 %v1128, %v1259
  %v1261 = vpop.f32.mrb[0].mxu0
  %1262 = vmatprep.mubr.f32.mxu0 0.0
  %1263 = vmatmul.mubr.f32.gmra.mrb[0].mxu0 %v1143
  %v1264 = vpop.f32.mrb[0].mxu0
  %v1265 = vadd.f32 %v1128, %v1264
  %v1266 = vpop.f32.mrb[0].mxu0
  %1267 = vmatprep.mubr.f32.mxu0 0.0
  %1268 = vmatmul.mubr.f32.gmra.mrb[0].mxu0 %v1146
  %v1269 = vpop.f32.mrb[0].mxu0
  %v1270 = vadd.f32 %v1128, %v1269
  %v1271 = vpop.f32.mrb[0].mxu0
  %1272 = vmatprep.mubr.f32.mxu0 0.0
  %1273 = vmatmul.mubr.f32.gmra.mrb[0].mxu0 %v1149
  %v1274 = vpop.f32.mrb[0].mxu0
  %v1275 = vadd.f32 %v1128, %v1274
  %v1276 = vpop.f32.mrb[0].mxu0
  %1277 = vmatprep.mubr.f32.mxu0 0.0
  %1278 = vmatmul.mubr.f32.gmra.mrb[0].mxu0 %v1152
  %v1279 = vpop.f32.mrb[0].mxu0
  %v1280 = vadd.f32 %v1128, %v1279
  %v1281 = vpop.f32.mrb[0].mxu0
  %1282 = vmatprep.mubr.f32.mxu0 0.0
  %1283 = vmatmul.mubr.f32.gmra.mrb[0].mxu0 %v1155
  %v1284 = vpop.f32.mrb[0].mxu0
  %v1285 = vadd.f32 %v1128, %v1284
  %v1286 = vpop.f32.mrb[0].mxu0
  %1287 = vmatprep.mubr.f32.mxu0 0.0
  %1288 = vmatmul.mubr.f32.gmra.mrb[0].mxu0 %v1158
  %v1289 = vpop.f32.mrb[0].mxu0
  %v1290 = vadd.f32 %v1128, %v1289
  %v1291 = vpop.f32.mrb[0].mxu0
  %1292 = vmatprep.mubr.f32.mxu0 0.0
  %1293 = vmatmul.mubr.f32.gmra.mrb[0].mxu0 %v1161
  %v1294 = vpop.f32.mrb[0].mxu0
  %v1295 = vadd.f32 %v1128, %v1294
  %v1296 = vpop.f32.mrb[0].mxu0
  %1297 = vmatprep.mubr.f32.mxu0 0.0
  %1298 = vmatmul.mubr.f32.gmra.mrb[0].mxu0 %v1164
  %v1299 = vpop.f32.mrb[0].mxu0
  %v1300 = vadd.f32 %v1128, %v1299
  %v1301 = vpop.f32.mrb[0].mxu0
  %1302 = vmatprep.mubr.f32.mxu0 0.0
  %1303 = vmatmul.mubr.f32.gmra.mrb[0].mxu0 %v1167
  %v1304 = vpop.f32.mrb[0].mxu0
  %v1305 = vadd.f32 %v1128, %v1304
  %v1306 = vpop.f32.mrb[0].mxu0
  %1307 = vmatprep.mubr.f32.mxu0 0.0
  %1308 = vmatmul.mubr.f32.gmra.mrb[0].mxu0 %v1170
  %v1309 = vpop.f32.mrb[0].mxu0
  %v1310 = vadd.f32 %v1128, %v1309
  %v1311 = vpop.f32.mrb[0].mxu0
  %1312 = vmatprep.mubr.f32.mxu0 0.0
  %1313 = vmatmul.mubr.f32.gmra.mrb[0].mxu0 %v1173
  %v1314 = vpop.f32.mrb[0].mxu0
  %v1315 = vadd.f32 %v1128, %v1314
  %v1316 = vpop.f32.mrb[0].mxu0
  %1317 = vmatprep.mubr.f32.mxu0 0.0
  %1318 = vmatmul.mubr.f32.gmra.mrb[0].mxu0 %v1176
  %v1319 = vpop.f32.mrb[0].mxu0
  %v1320 = vadd.f32 %v1128, %v1319
  %v1321 = vpop.f32.mrb[0].mxu0
  %1322 = vdwg.mxu0
  %1327 = vrot.lane.b32.xlu0 %v1265, 8
  %v1328 = vpop.permute.xlu0 %1327
  %1329 = vrot.lane.b32.xlu0 %v1270, 8
  %v1330 = vpop.permute.xlu0 %1329
  %1331 = vrot.lane.b32.xlu0 %v1275, 8
  %v1332 = vpop.permute.xlu0 %1331
  %1333 = vrot.lane.b32.xlu0 %v1280, 8
  %v1334 = vpop.permute.xlu0 %1333
  %1343 = vrot.lane.b32.xlu0 %v1285, 16
  %v1344 = vpop.permute.xlu0 %1343
  %1345 = vrot.lane.b32.xlu0 %v1290, 16
  %v1346 = vpop.permute.xlu0 %1345
  %1347 = vrot.lane.b32.xlu0 %v1295, 16
  %v1348 = vpop.permute.xlu0 %1347
  %1349 = vrot.lane.b32.xlu0 %v1300, 16
  %v1350 = vpop.permute.xlu0 %1349
  %1359 = vrot.lane.b32.xlu0 %v1305, 24
  %v1360 = vpop.permute.xlu0 %1359
  %1361 = vrot.lane.b32.xlu0 %v1310, 24
  %v1362 = vpop.permute.xlu0 %1361
  %1363 = vrot.lane.b32.xlu0 %v1315, 24
  %v1364 = vpop.permute.xlu0 %1363
  %1365 = vrot.lane.b32.xlu0 %v1320, 24
  %v1366 = vpop.permute.xlu0 %1365
  %v1371 = vsel %vm1087, %v1245, %v1328
  %v1372 = vsel %vm1087, %v1250, %v1330
  %v1373 = vsel %vm1087, %v1255, %v1332
  %v1374 = vsel %vm1087, %v1260, %v1334
  %v1375 = vsel %vm57, %v1371, %v1344
  %v1376 = vsel %vm57, %v1372, %v1346
  %v1377 = vsel %vm57, %v1373, %v1348
  %v1378 = vsel %vm57, %v1374, %v1350
  %vm1379 = vcmask 195584
  %v1380 = vsel %vm1379, %v1375, %v1360
  %v1381 = vsel %vm1379, %v1376, %v1362
  %v1382 = vsel %vm1379, %v1377, %v1364
  %v1383 = vsel %vm1379, %v1378, %v1366
  %v1384 = vld [vmem:[%s5] sm:$0xff]
  %v1385 = vld [vmem:[%s5 + $0x8] sm:$0xff]
  %v1386 = vld [vmem:[%s5 + $0x10] sm:$0xff]
  %v1387 = vld [vmem:[%s5 + $0x18] sm:$0xff]
  %v1388 = vld [vmem:[%s6] sm:$0x1]
  %v1390 = vlaneseq
  %v1391 = vshrl.u32 %v1390, 7
  %v1392 = vsub.s32 0, %v1391
  %v1393 = vrot.slane %v1388, %v1392
  %vm1395 = vcmask 261120
  %v1397 = vsel %vm1395, %v1380, 0
  %v1400 = vsel %vm1395, %v1381, 0
  %v1403 = vsel %vm1395, %v1382, 0
  %v1406 = vsel %vm1395, %v1383, 0
  %1408 = vmatprep.subr.mxu0 0.0
  %1409 = vmatpush1.msra.mxu0 %v1384
  %1410 = vmatprep.subr.mxu0 0.0
  %1411 = vmatpush1.msra.mxu0 %v1385
  %1412 = vmatprep.subr.mxu0 0.0
  %1413 = vmatpush1.msra.mxu0 %v1386
  %1414 = vmatprep.subr.mxu0 0.0
  %1415 = vmatpush1.msra.mxu0 %v1387
  %1416 = vmatprep.subr.mxu0 0.0
  %1417 = vmatpush1.msra.mxu0 0.0
  %1418 = vmatprep.subr.mxu0 0.0
  %1419 = vmatpush1.msra.mxu0 0.0
  %1420 = vmatprep.subr.mxu0 0.0
  %1421 = vmatpush1.msra.mxu0 0.0
  %1422 = vmatprep.subr.mxu0 0.0
  %1423 = vmatpush1.msra.mxu0 0.0
  %1424 = vmatprep.subr.mxu0 0.0
  %1425 = vmatpush1.msra.mxu0 0.0
  %1426 = vmatprep.subr.mxu0 0.0
  %1427 = vmatpush1.msra.mxu0 0.0
  %1428 = vmatprep.subr.mxu0 0.0
  %1429 = vmatpush1.msra.mxu0 0.0
  %1430 = vmatprep.subr.mxu0 0.0
  %1431 = vmatpush1.msra.mxu0 0.0
  %1432 = vmatprep.subr.mxu0 0.0
  %1433 = vmatpush1.msra.mxu0 0.0
  %1434 = vmatprep.subr.mxu0 0.0
  %1435 = vmatpush1.msra.mxu0 0.0
  %1436 = vmatprep.subr.mxu0 0.0
  %1437 = vmatpush1.msra.mxu0 0.0
  %1438 = vmatprep.subr.mxu0 0.0
  %1439 = vmatpush1.msra.mxu0 0.0
  %1440 = vmatprep.subr.mxu0 0.0
  %1441 = vmatpush1.msra.mxu0 0.0
  %1442 = vmatprep.subr.mxu0 0.0
  %1443 = vmatpush1.msra.mxu0 0.0
  %1444 = vmatprep.subr.mxu0 0.0
  %1445 = vmatpush1.msra.mxu0 0.0
  %1446 = vmatprep.subr.mxu0 0.0
  %1447 = vmatpush1.msra.mxu0 0.0
  %1448 = vmatprep.subr.mxu0 0.0
  %1449 = vmatpush1.msra.mxu0 0.0
  %1450 = vmatprep.subr.mxu0 0.0
  %1451 = vmatpush1.msra.mxu0 0.0
  %1452 = vmatprep.subr.mxu0 0.0
  %1453 = vmatpush1.msra.mxu0 0.0
  %1454 = vmatprep.subr.mxu0 0.0
  %1455 = vmatpush1.msra.mxu0 0.0
  %1456 = vmatprep.subr.mxu0 0.0
  %1457 = vmatpush1.msra.mxu0 0.0
  %1458 = vmatprep.subr.mxu0 0.0
  %1459 = vmatpush1.msra.mxu0 0.0
  %1460 = vmatprep.subr.mxu0 0.0
  %1461 = vmatpush1.msra.mxu0 0.0
  %1462 = vmatprep.subr.mxu0 0.0
  %1463 = vmatpush1.msra.mxu0 0.0
  %1464 = vmatprep.subr.mxu0 0.0
  %1465 = vmatpush1.msra.mxu0 0.0
  %1466 = vmatprep.subr.mxu0 0.0
  %1467 = vmatpush1.msra.mxu0 0.0
  %1468 = vmatprep.subr.mxu0 0.0
  %1469 = vmatpush1.msra.mxu0 0.0
  %1470 = vmatprep.subr.mxu0 0.0
  %1471 = vmatpush1.msra.mxu0 0.0
  %1472 = vmatprep.mubr.f32.mxu0 0.0
  %1473 = vmatmul.mubr.f32.gmra.mrb[0].mxu0 %v1397
  %v1474 = vpop.f32.mrb[0].mxu0
  %v1475 = vadd.f32 %v1393, %v1474
  %v1476 = vpop.f32.mrb[0].mxu0
  %1477 = vmatprep.mubr.f32.mxu0 0.0
  %1478 = vmatmul.mubr.f32.gmra.mrb[0].mxu0 %v1400
  %v1479 = vpop.f32.mrb[0].mxu0
  %v1480 = vadd.f32 %v1393, %v1479
  %v1481 = vpop.f32.mrb[0].mxu0
  %1482 = vmatprep.mubr.f32.mxu0 0.0
  %1483 = vmatmul.mubr.f32.gmra.mrb[0].mxu0 %v1403
  %v1484 = vpop.f32.mrb[0].mxu0
  %v1485 = vadd.f32 %v1393, %v1484
  %v1486 = vpop.f32.mrb[0].mxu0
  %1487 = vmatprep.mubr.f32.mxu0 0.0
  %1488 = vmatmul.mubr.f32.gmra.mrb[0].mxu0 %v1406
  %v1489 = vpop.f32.mrb[0].mxu0
  %v1490 = vadd.f32 %v1393, %v1489
  %v1491 = vpop.f32.mrb[0].mxu0
  %1492 = vdwg.mxu0
  %1494 = vrot.lane.b32.xlu0 %v1480, 16
  %v1495 = vpop.permute.xlu0 %1494
  %1498 = vrot.lane.b32.xlu0 %v1485, 32
  %v1499 = vpop.permute.xlu0 %1498
  %1502 = vrot.lane.b32.xlu0 %v1490, 48
  %v1503 = vpop.permute.xlu0 %1502
  %v1505 = vsel %vm57, %v1475, %v1495
  %v1506 = vsel %vm1395, %v1505, %v1499
  %vm1507 = vcmask 392192
  %v1508 = vsel %vm1507, %v1506, %v1503
  %v1509 = vld [vmem:[%s7] sm:$0xff]
  %v1510 = vld [vmem:[%s7 + $0x8] sm:$0xff]
  %v1511 = vld [vmem:[%s7 + $0x10] sm:$0xff]
  %v1512 = vld [vmem:[%s7 + $0x18] sm:$0xff]
  %v1513 = vld [vmem:[%s7 + $0x20] sm:$0xff]
  %v1514 = vld [vmem:[%s7 + $0x28] sm:$0xff]
  %v1515 = vld [vmem:[%s7 + $0x30] sm:$0xff]
  %v1516 = vld [vmem:[%s7 + $0x38] sm:$0xff]
  %v1517 = vld [vmem:[%s8] sm:$0x1]
  %v1519 = vlaneseq
  %v1520 = vshrl.u32 %v1519, 7
  %v1521 = vsub.s32 0, %v1520
  %v1522 = vrot.slane %v1517, %v1521
  %vm1524 = vcmask 523264
  %v1526 = vsel %vm1524, %v1508, 0
  %1528 = vmatprep.subr.mxu0 0.0
  %1529 = vmatpush1.msra.mxu0 %v1509
  %1530 = vmatprep.subr.mxu0 0.0
  %1531 = vmatpush1.msra.mxu0 %v1510
  %1532 = vmatprep.subr.mxu0 0.0
  %1533 = vmatpush1.msra.mxu0 %v1511
  %1534 = vmatprep.subr.mxu0 0.0
  %1535 = vmatpush1.msra.mxu0 %v1512
  %1536 = vmatprep.subr.mxu0 0.0
  %1537 = vmatpush1.msra.mxu0 %v1513
  %1538 = vmatprep.subr.mxu0 0.0
  %1539 = vmatpush1.msra.mxu0 %v1514
  %1540 = vmatprep.subr.mxu0 0.0
  %1541 = vmatpush1.msra.mxu0 %v1515
  %1542 = vmatprep.subr.mxu0 0.0
  %1543 = vmatpush1.msra.mxu0 %v1516
  %1544 = vmatprep.subr.mxu0 0.0
  %1545 = vmatpush1.msra.mxu0 0.0
  %1546 = vmatprep.subr.mxu0 0.0
  %1547 = vmatpush1.msra.mxu0 0.0
  %1548 = vmatprep.subr.mxu0 0.0
  %1549 = vmatpush1.msra.mxu0 0.0
  %1550 = vmatprep.subr.mxu0 0.0
  %1551 = vmatpush1.msra.mxu0 0.0
  %1552 = vmatprep.subr.mxu0 0.0
  %1553 = vmatpush1.msra.mxu0 0.0
  %1554 = vmatprep.subr.mxu0 0.0
  %1555 = vmatpush1.msra.mxu0 0.0
  %1556 = vmatprep.subr.mxu0 0.0
  %1557 = vmatpush1.msra.mxu0 0.0
  %1558 = vmatprep.subr.mxu0 0.0
  %1559 = vmatpush1.msra.mxu0 0.0
  %1560 = vmatprep.subr.mxu0 0.0
  %1561 = vmatpush1.msra.mxu0 0.0
  %1562 = vmatprep.subr.mxu0 0.0
  %1563 = vmatpush1.msra.mxu0 0.0
  %1564 = vmatprep.subr.mxu0 0.0
  %1565 = vmatpush1.msra.mxu0 0.0
  %1566 = vmatprep.subr.mxu0 0.0
  %1567 = vmatpush1.msra.mxu0 0.0
  %1568 = vmatprep.subr.mxu0 0.0
  %1569 = vmatpush1.msra.mxu0 0.0
  %1570 = vmatprep.subr.mxu0 0.0
  %1571 = vmatpush1.msra.mxu0 0.0
  %1572 = vmatprep.subr.mxu0 0.0
  %1573 = vmatpush1.msra.mxu0 0.0
  %1574 = vmatprep.subr.mxu0 0.0
  %1575 = vmatpush1.msra.mxu0 0.0
  %1576 = vmatprep.subr.mxu0 0.0
  %1577 = vmatpush1.msra.mxu0 0.0
  %1578 = vmatprep.subr.mxu0 0.0
  %1579 = vmatpush1.msra.mxu0 0.0
  %1580 = vmatprep.subr.mxu0 0.0
  %1581 = vmatpush1.msra.mxu0 0.0
  %1582 = vmatprep.subr.mxu0 0.0
  %1583 = vmatpush1.msra.mxu0 0.0
  %1584 = vmatprep.subr.mxu0 0.0
  %1585 = vmatpush1.msra.mxu0 0.0
  %1586 = vmatprep.subr.mxu0 0.0
  %1587 = vmatpush1.msra.mxu0 0.0
  %1588 = vmatprep.subr.mxu0 0.0
  %1589 = vmatpush1.msra.mxu0 0.0
  %1590 = vmatprep.subr.mxu0 0.0
  %1591 = vmatpush1.msra.mxu0 0.0
  %1592 = vmatprep.mubr.f32.mxu0 0.0
  %1593 = vmatmul.mubr.f32.gmra.mrb[0].mxu0 %v1526
  %v1594 = vpop.f32.mrb[0].mxu0
  %v1595 = vadd.f32 %v1522, %v1594
  %v1596 = vpop.f32.mrb[0].mxu0
  %1597 = vdwg.mxu0
  %1598 = vst.msk [vmem:[%s9] sm:$0xff] %vm1395, %v1595
  // Predicated region
  $region38: #{_lambda_.1} parent=0 // pred_check
    _
  $region39: #{_lambda_.1} parent=0 // pred_check_branch
    %1600 = sbr.rel (0) target = $region41
  $region40: #{_lambda_.1} parent=0 // pred_region
    _
  $region41: #{_lambda_.1} parent=0 // pred_fallthru
    _
  // Predicated region
  $region42: #{_lambda_.1} parent=0 // pred_check
    _
  $region43: #{_lambda_.1} parent=0 // pred_check_branch
    %1602 = sbr.rel (0) target = $region45
  $region44: #{_lambda_.1} parent=0 // pred_region
    _
  $region45: #{_lambda_.1} parent=0 // pred_fallthru
    _

</llo_original>
